<compile_context>
chip_gen: v6e
topology: v6e:2x2x1
jax: 0.10.0
libtpu: 0.0.40
codegen_flags: <defaults>
</compile_context>

<pallas_src>
import math

import jax
import jax.numpy as jnp
from jax.experimental import pallas as pl
from jax.experimental.pallas import tpu as pltpu

D_MODEL = 32
NHEAD = 4
DIM_FF = 64
SEQ = 8
BATCH = 2
EPS = 1e-5  # layer_norm_eps

# Lane offsets of the 128-aligned blocks inside the weight slab.
_QKV_OFF = 0          # (E, 3E)   wq|wk|wv (wq pre-scaled by 1/sqrt(dh))
_WO_OFF = 128         # (E, E)    wo
_W1_OFF = 256         # (E, F)    w1
_W2_OFF = 384         # (F, E)    w2 (un-transposed -> NN dot)
_W_SLAB_ROWS = DIM_FF # 64 rows so w2 fits un-transposed
_W_SLAB_LANES = 512


def _make_kernel(batch):
    E, F, H = D_MODEL, DIM_FF, NHEAD
    dh = E // H
    pow2_batch = (batch & (batch - 1)) == 0

    def kernel(x_ref, w_ref, vec_ref, out_ref):
        # TODO(synk): nn.Dropout (attn / out / ff) is identity here (eval mode).
        x = x_ref[...].astype(jnp.float32)            # (M, E), rows in (s, b) order
        M = x.shape[0]

        # --- fused QKV in-projection: one matmul with N = 3E ---
        qkv = jnp.dot(x, w_ref[0:E, _QKV_OFF:_QKV_OFF + 3 * E],
                      preferred_element_type=jnp.float32) + vec_ref[0:1, 0:3 * E]

        # --- same-batch attention mask, built once as an additive f32 mask ---
        # Row i of the flat (B*S) layout belongs to batch (i % B).
        rid = jax.lax.broadcasted_iota(jnp.int32, (M, M), 0)
        cid = jax.lax.broadcasted_iota(jnp.int32, (M, M), 1)
        if pow2_batch:
            same_batch = ((rid ^ cid) & (batch - 1)) == 0
        else:
            same_batch = ((rid - cid) % batch) == 0
        add_mask = jnp.where(same_batch, jnp.float32(0.0), jnp.float32(-1e30))

        # --- per-head attention with fused out-projection accumulation ---
        sa = jnp.zeros((M, E), jnp.float32)
        for h in range(H):
            lo = h * dh
            qh = qkv[:, lo:lo + dh]                          # (M, dh), pre-scaled
            kh = qkv[:, E + lo:E + lo + dh]                  # (M, dh)
            vh = qkv[:, 2 * E + lo:2 * E + lo + dh]          # (M, dh)
            # NT matmul: contract last dims directly, no kh.T materialization.
            s = jax.lax.dot_general(qh, kh, (((1,), (1,)), ((), ())),
                                    preferred_element_type=jnp.float32)
            s = s + add_mask                                 # vadd, blocks cross-batch
            s = s - jnp.max(s, axis=-1, keepdims=True)
            e = jnp.exp(s)
            denom = jnp.sum(e, axis=-1, keepdims=True)
            o = jnp.dot(e, vh, preferred_element_type=jnp.float32)
            # Normalization folded after the PV matmul; reciprocal on the EUP.
            o = o * pl.reciprocal(denom, approx=True)
            # Accumulate the out-projection directly (no VMEM round-trip).
            sa = sa + jnp.dot(o, w_ref[lo:lo + dh, _WO_OFF:_WO_OFF + E],
                              preferred_element_type=jnp.float32)
        sa = sa + vec_ref[1:2, 0:E]                          # out-projection bias

        # --- residual + LayerNorm1 ---
        h1 = x + sa
        mu1 = jnp.mean(h1, axis=-1, keepdims=True)
        var1 = jnp.mean((h1 - mu1) ** 2, axis=-1, keepdims=True)
        h1 = (h1 - mu1) * jax.lax.rsqrt(var1 + EPS) * vec_ref[4:5, 0:E] \
             + vec_ref[5:6, 0:E]

        # --- feed-forward: Linear -> ReLU -> Linear (w2 un-transposed, NN dot) ---
        f = jnp.dot(h1, w_ref[0:E, _W1_OFF:_W1_OFF + F],
                    preferred_element_type=jnp.float32) + vec_ref[2:3, 0:F]
        f = jnp.maximum(f, 0.0)
        f = jnp.dot(f, w_ref[0:F, _W2_OFF:_W2_OFF + E],
                    preferred_element_type=jnp.float32) + vec_ref[3:4, 0:E]

        # --- residual + LayerNorm2 ---
        h2 = h1 + f
        mu2 = jnp.mean(h2, axis=-1, keepdims=True)
        var2 = jnp.mean((h2 - mu2) ** 2, axis=-1, keepdims=True)
        out = (h2 - mu2) * jax.lax.rsqrt(var2 + EPS) * vec_ref[6:7, 0:E] \
              + vec_ref[7:8, 0:E]

        out_ref[...] = out.astype(out_ref.dtype)

    return kernel


def pack_params(p):
    """Pack 16 parameter arrays into 2 slabs (lane-aligned weight slab + vector slab)."""
    E, F, H = D_MODEL, DIM_FF, NHEAD
    dh = E // H
    scale = jnp.float32(1.0 / math.sqrt(dh))

    # Fold the attention 1/sqrt(dh) scaling into wq and bq (one-time host pack).
    wq = p["wq"] * scale
    bq = p["bq"] * scale

    # Weight slab (64, 512), every block starts at a 128-lane boundary:
    #   lanes [  0:128): wq|wk|wv  in rows 0:E
    #   lanes [128:256): wo        in rows 0:E
    #   lanes [256:384): w1        in rows 0:E
    #   lanes [384:512): w2        in rows 0:F (un-transposed)
    w_slab = jnp.zeros((_W_SLAB_ROWS, _W_SLAB_LANES), jnp.float32)
    w_slab = w_slab.at[0:E, _QKV_OFF:_QKV_OFF + 3 * E].set(
        jnp.concatenate([wq, p["wk"], p["wv"]], axis=1))
    w_slab = w_slab.at[0:E, _WO_OFF:_WO_OFF + E].set(p["wo"])
    w_slab = w_slab.at[0:E, _W1_OFF:_W1_OFF + F].set(p["w1"])
    w_slab = w_slab.at[0:F, _W2_OFF:_W2_OFF + E].set(p["w2"])

    def row(v):
        v = v.reshape(1, -1)
        return jnp.pad(v, ((0, 0), (0, 128 - v.shape[1])))

    # Vector slab (8, 128): one parameter per row, padded to 128 lanes.
    vec_slab = jnp.concatenate([
        row(jnp.concatenate([bq, p["bk"], p["bv"]], axis=1)),  # row 0: b_qkv (bq pre-scaled)
        row(p["bo"]),                                          # row 1
        row(p["b1"]),                                          # row 2
        row(p["b2"]),                                          # row 3
        row(p["n1w"]), row(p["n1b"]),                          # rows 4-5
        row(p["n2w"]), row(p["n2b"]),                          # rows 6-7
    ], axis=0)
    return w_slab, vec_slab


def transformer_encoder_layer(src, w_slab, vec_slab):
    # src: (S, B, E) — PyTorch default (batch_first=False) layout.
    # Contract: row i of the flat view is (seq = i // B, batch = i % B); the
    # in-kernel same-batch mask depends on this interleaved order.
    S, B, E = src.shape
    M = S * B
    x2d = src.reshape(M, E)   # free reshape

    kernel = _make_kernel(B)
    out2d = pl.pallas_call(
        kernel,
        out_shape=jax.ShapeDtypeStruct((M, E), src.dtype),
        grid=(1,),
        in_specs=[
            pl.BlockSpec((M, E), lambda i: (0, 0)),
            pl.BlockSpec(w_slab.shape, lambda i: (0, 0)),
            pl.BlockSpec(vec_slab.shape, lambda i: (0, 0)),
        ],
        out_specs=pl.BlockSpec((M, E), lambda i: (0, 0)),
        compiler_params=pltpu.CompilerParams(
            dimension_semantics=("arbitrary",)),
    )(x2d, w_slab, vec_slab)
    return out2d.reshape(S, B, E)


def make_params(key):
    ks = jax.random.split(key, 12)
    s = 0.02
    p = {
        # attention in-projection, stored pre-transposed as (in, out) so the
        # kernel computes x @ W  (PyTorch Linear does x @ W_pt.T).
        "wq": s * jax.random.normal(ks[0], (D_MODEL, D_MODEL), jnp.float32),
        "wk": s * jax.random.normal(ks[1], (D_MODEL, D_MODEL), jnp.float32),
        "wv": s * jax.random.normal(ks[2], (D_MODEL, D_MODEL), jnp.float32),
        "bq": s * jax.random.normal(ks[3], (1, D_MODEL), jnp.float32),
        "bk": s * jax.random.normal(ks[4], (1, D_MODEL), jnp.float32),
        "bv": s * jax.random.normal(ks[5], (1, D_MODEL), jnp.float32),
        "wo": s * jax.random.normal(ks[6], (D_MODEL, D_MODEL), jnp.float32),
        "bo": s * jax.random.normal(ks[7], (1, D_MODEL), jnp.float32),
        # layer norms
        "n1w": jnp.ones((1, D_MODEL), jnp.float32),
        "n1b": jnp.zeros((1, D_MODEL), jnp.float32),
        "n2w": jnp.ones((1, D_MODEL), jnp.float32),
        "n2b": jnp.zeros((1, D_MODEL), jnp.float32),
        # feed-forward
        "w1": s * jax.random.normal(ks[8], (D_MODEL, DIM_FF), jnp.float32),
        "b1": s * jax.random.normal(ks[9], (1, DIM_FF), jnp.float32),
        "w2": s * jax.random.normal(ks[10], (DIM_FF, D_MODEL), jnp.float32),
        "b2": s * jax.random.normal(ks[11], (1, D_MODEL), jnp.float32),
    }
    return p


def reference(src, p):
    # Pure-JAX reference of the same math (for sanity checking the kernel).
    S, B, E = src.shape
    dh = E // NHEAD
    x = jnp.transpose(src, (1, 0, 2)).astype(jnp.float32)  # (B, S, E)
    q = x @ p["wq"] + p["bq"]
    k = x @ p["wk"] + p["bk"]
    v = x @ p["wv"] + p["bv"]

    def heads(t):
        return t.reshape(B, S, NHEAD, dh).transpose(0, 2, 1, 3)  # (B,H,S,dh)

    qh, kh, vh = heads(q) / math.sqrt(dh), heads(k), heads(v)
    s = jnp.einsum("bhsd,bhtd->bhst", qh, kh)
    pw = jax.nn.softmax(s, axis=-1)
    a = jnp.einsum("bhst,bhtd->bhsd", pw, vh)
    a = a.transpose(0, 2, 1, 3).reshape(B, S, E)
    sa = a @ p["wo"] + p["bo"]

    def ln(t, w, b):
        mu = t.mean(-1, keepdims=True)
        var = ((t - mu) ** 2).mean(-1, keepdims=True)
        return (t - mu) * jax.lax.rsqrt(var + EPS) * w + b

    h1 = ln(x + sa, p["n1w"], p["n1b"])
    f = jnp.maximum(h1 @ p["w1"] + p["b1"], 0.0) @ p["w2"] + p["b2"]
    out = ln(h1 + f, p["n2w"], p["n2b"])
    return jnp.transpose(out, (1, 0, 2))


if __name__ == "__main__":
    key = jax.random.PRNGKey(0)
    k_src, k_par = jax.random.split(key)
    src = jax.random.normal(k_src, (SEQ, BATCH, D_MODEL), jnp.float32)
    params = make_params(k_par)
    w_slab, vec_slab = pack_params(params)

    out = transformer_encoder_layer(src, w_slab, vec_slab)
    out = jax.block_until_ready(out)

    ref = reference(src, params)
    assert out.shape == (SEQ, BATCH, D_MODEL), out.shape
    assert jnp.allclose(out, ref, atol=1e-4, rtol=1e-4), float(
        jnp.max(jnp.abs(out - ref)))

    print("KERNEL_OK")
</pallas_src>

<mosaic_0001>
module attributes {stable_mosaic.version = 11 : i64} {
  func.func @kernel(%arg0: i32, %arg1: memref<16x32xf32, #tpu.memory_space<vmem>>, %arg2: memref<64x512xf32, #tpu.memory_space<vmem>>, %arg3: memref<8x128xf32, #tpu.memory_space<vmem>>, %arg4: memref<16x32xf32, #tpu.memory_space<vmem>>) attributes {dimension_semantics = [#tpu.dimension_semantics<arbitrary>], iteration_bounds = array<i64: 1>, scalar_prefetch = 0 : i64, scratch_operands = 0 : i64, tpu.core_type = #tpu.core_type<tc>, window_params = [{pipeline_mode = #tpu.pipeline_mode<synchronous>, transform_indices = @transform_0, window_bounds = array<i64: 16, 32>}, {pipeline_mode = #tpu.pipeline_mode<synchronous>, transform_indices = @transform_1, window_bounds = array<i64: 64, 512>}, {pipeline_mode = #tpu.pipeline_mode<synchronous>, transform_indices = @transform_2, window_bounds = array<i64: 8, 128>}, {pipeline_mode = #tpu.pipeline_mode<synchronous>, transform_indices = @transform_3, window_bounds = array<i64: 16, 32>}]} {
    %c0 = arith.constant 0 : index
    %c0_0 = arith.constant 0 : index
    %0 = vector.load %arg1[%c0, %c0_0] : memref<16x32xf32, #tpu.memory_space<vmem>>, vector<16x32xf32>
    %c0_1 = arith.constant 0 : index
    %c0_2 = arith.constant 0 : index
    %1 = vector.load %arg2[%c0_1, %c0_2] : memref<64x512xf32, #tpu.memory_space<vmem>>, vector<32x96xf32>
    %cst = arith.constant dense<0.000000e+00> : vector<16x96xf32>
    %2 = tpu.matmul %0, %1, %cst {dimension_numbers = #tpu.dot_dimension_numbers<[1], [0], [0], [1], [0, 0, 1, 1], [], []>} : vector<16x32xf32>, vector<32x96xf32>, vector<16x96xf32> -> vector<16x96xf32>
    %c0_3 = arith.constant 0 : index
    %c0_4 = arith.constant 0 : index
    %3 = vector.load %arg3[%c0_3, %c0_4] : memref<8x128xf32, #tpu.memory_space<vmem>>, vector<1x96xf32>
    %4 = vector.broadcast %3 : vector<1x96xf32> to vector<16x96xf32>
    %5 = arith.addf %2, %4 : vector<16x96xf32>
    %6 = tpu.iota {dimensions = array<i32: 0>} : vector<16x16xi32>
    %7 = tpu.iota {dimensions = array<i32: 1>} : vector<16x16xi32>
    %8 = arith.xori %6, %7 : vector<16x16xi32>
    %c1_i32 = arith.constant 1 : i32
    %9 = vector.broadcast %c1_i32 : i32 to vector<16x16xi32>
    %10 = arith.andi %8, %9 : vector<16x16xi32>
    %c0_i32 = arith.constant 0 : i32
    %11 = vector.broadcast %c0_i32 : i32 to vector<16x16xi32>
    %12 = arith.cmpi eq, %10, %11 : vector<16x16xi32>
    %cst_5 = arith.constant 0.000000e+00 : f32
    %cst_6 = arith.constant -1.000000e+30 : f32
    %13 = vector.broadcast %cst_5 : f32 to vector<16x16xf32>
    %14 = vector.broadcast %cst_6 : f32 to vector<16x16xf32>
    %15 = arith.select %12, %13, %14 : vector<16x16xi1>, vector<16x16xf32>
    %cst_7 = arith.constant 0.000000e+00 : f32
    %16 = vector.broadcast %cst_7 : f32 to vector<16x32xf32>
    %17 = vector.extract_strided_slice %5 {offsets = [0, 0], sizes = [16, 8], strides = [1, 1]} : vector<16x96xf32> to vector<16x8xf32>
    %18 = vector.extract_strided_slice %5 {offsets = [0, 32], sizes = [16, 8], strides = [1, 1]} : vector<16x96xf32> to vector<16x8xf32>
    %19 = vector.extract_strided_slice %5 {offsets = [0, 64], sizes = [16, 8], strides = [1, 1]} : vector<16x96xf32> to vector<16x8xf32>
    %cst_8 = arith.constant dense<0.000000e+00> : vector<16x16xf32>
    %20 = tpu.matmul %17, %18, %cst_8 {dimension_numbers = #tpu.dot_dimension_numbers<[1], [1], [0], [0], [0, 0, 1, 0], [], []>} : vector<16x8xf32>, vector<16x8xf32>, vector<16x16xf32> -> vector<16x16xf32>
    %21 = arith.addf %20, %15 : vector<16x16xf32>
    %cst_9 = arith.constant dense<0xFF800000> : vector<16xf32>
    %22 = vector.multi_reduction <maximumf>, %21, %cst_9 [1] : vector<16x16xf32> to vector<16xf32>
    %23 = vector.shape_cast %22 : vector<16xf32> to vector<16x1xf32>
    %24 = vector.broadcast %23 : vector<16x1xf32> to vector<16x16xf32>
    %25 = arith.subf %21, %24 : vector<16x16xf32>
    %26 = math.exp %25 : vector<16x16xf32>
    %cst_10 = arith.constant dense<0.000000e+00> : vector<16xf32>
    %27 = vector.multi_reduction <add>, %26, %cst_10 [1] : vector<16x16xf32> to vector<16xf32>
    %28 = vector.shape_cast %27 : vector<16xf32> to vector<16x1xf32>
    %cst_11 = arith.constant dense<0.000000e+00> : vector<16x8xf32>
    %29 = tpu.matmul %26, %19, %cst_11 {dimension_numbers = #tpu.dot_dimension_numbers<[1], [0], [0], [1], [0, 0, 1, 1], [], []>} : vector<16x16xf32>, vector<16x8xf32>, vector<16x8xf32> -> vector<16x8xf32>
    %30 = tpu.reciprocal %28 {approx = true} : vector<16x1xf32> -> vector<16x1xf32>
    %31 = vector.broadcast %30 : vector<16x1xf32> to vector<16x8xf32>
    %32 = arith.mulf %29, %31 : vector<16x8xf32>
    %c0_12 = arith.constant 0 : index
    %c128 = arith.constant 128 : index
    %33 = vector.load %arg2[%c0_12, %c128] : memref<64x512xf32, #tpu.memory_space<vmem>>, vector<8x32xf32>
    %cst_13 = arith.constant dense<0.000000e+00> : vector<16x32xf32>
    %34 = tpu.matmul %32, %33, %cst_13 {dimension_numbers = #tpu.dot_dimension_numbers<[1], [0], [0], [1], [0, 0, 1, 1], [], []>} : vector<16x8xf32>, vector<8x32xf32>, vector<16x32xf32> -> vector<16x32xf32>
    %35 = arith.addf %16, %34 : vector<16x32xf32>
    %36 = vector.extract_strided_slice %5 {offsets = [0, 8], sizes = [16, 8], strides = [1, 1]} : vector<16x96xf32> to vector<16x8xf32>
    %37 = vector.extract_strided_slice %5 {offsets = [0, 40], sizes = [16, 8], strides = [1, 1]} : vector<16x96xf32> to vector<16x8xf32>
    %38 = vector.extract_strided_slice %5 {offsets = [0, 72], sizes = [16, 8], strides = [1, 1]} : vector<16x96xf32> to vector<16x8xf32>
    %cst_14 = arith.constant dense<0.000000e+00> : vector<16x16xf32>
    %39 = tpu.matmul %36, %37, %cst_14 {dimension_numbers = #tpu.dot_dimension_numbers<[1], [1], [0], [0], [0, 0, 1, 0], [], []>} : vector<16x8xf32>, vector<16x8xf32>, vector<16x16xf32> -> vector<16x16xf32>
    %40 = arith.addf %39, %15 : vector<16x16xf32>
    %cst_15 = arith.constant dense<0xFF800000> : vector<16xf32>
    %41 = vector.multi_reduction <maximumf>, %40, %cst_15 [1] : vector<16x16xf32> to vector<16xf32>
    %42 = vector.shape_cast %41 : vector<16xf32> to vector<16x1xf32>
    %43 = vector.broadcast %42 : vector<16x1xf32> to vector<16x16xf32>
    %44 = arith.subf %40, %43 : vector<16x16xf32>
    %45 = math.exp %44 : vector<16x16xf32>
    %cst_16 = arith.constant dense<0.000000e+00> : vector<16xf32>
    %46 = vector.multi_reduction <add>, %45, %cst_16 [1] : vector<16x16xf32> to vector<16xf32>
    %47 = vector.shape_cast %46 : vector<16xf32> to vector<16x1xf32>
    %cst_17 = arith.constant dense<0.000000e+00> : vector<16x8xf32>
    %48 = tpu.matmul %45, %38, %cst_17 {dimension_numbers = #tpu.dot_dimension_numbers<[1], [0], [0], [1], [0, 0, 1, 1], [], []>} : vector<16x16xf32>, vector<16x8xf32>, vector<16x8xf32> -> vector<16x8xf32>
    %49 = tpu.reciprocal %47 {approx = true} : vector<16x1xf32> -> vector<16x1xf32>
    %50 = vector.broadcast %49 : vector<16x1xf32> to vector<16x8xf32>
    %51 = arith.mulf %48, %50 : vector<16x8xf32>
    %c8 = arith.constant 8 : index
    %c128_18 = arith.constant 128 : index
    %52 = vector.load %arg2[%c8, %c128_18] : memref<64x512xf32, #tpu.memory_space<vmem>>, vector<8x32xf32>
    %cst_19 = arith.constant dense<0.000000e+00> : vector<16x32xf32>
    %53 = tpu.matmul %51, %52, %cst_19 {dimension_numbers = #tpu.dot_dimension_numbers<[1], [0], [0], [1], [0, 0, 1, 1], [], []>} : vector<16x8xf32>, vector<8x32xf32>, vector<16x32xf32> -> vector<16x32xf32>
    %54 = arith.addf %35, %53 : vector<16x32xf32>
    %55 = vector.extract_strided_slice %5 {offsets = [0, 16], sizes = [16, 8], strides = [1, 1]} : vector<16x96xf32> to vector<16x8xf32>
    %56 = vector.extract_strided_slice %5 {offsets = [0, 48], sizes = [16, 8], strides = [1, 1]} : vector<16x96xf32> to vector<16x8xf32>
    %57 = vector.extract_strided_slice %5 {offsets = [0, 80], sizes = [16, 8], strides = [1, 1]} : vector<16x96xf32> to vector<16x8xf32>
    %cst_20 = arith.constant dense<0.000000e+00> : vector<16x16xf32>
    %58 = tpu.matmul %55, %56, %cst_20 {dimension_numbers = #tpu.dot_dimension_numbers<[1], [1], [0], [0], [0, 0, 1, 0], [], []>} : vector<16x8xf32>, vector<16x8xf32>, vector<16x16xf32> -> vector<16x16xf32>
    %59 = arith.addf %58, %15 : vector<16x16xf32>
    %cst_21 = arith.constant dense<0xFF800000> : vector<16xf32>
    %60 = vector.multi_reduction <maximumf>, %59, %cst_21 [1] : vector<16x16xf32> to vector<16xf32>
    %61 = vector.shape_cast %60 : vector<16xf32> to vector<16x1xf32>
    %62 = vector.broadcast %61 : vector<16x1xf32> to vector<16x16xf32>
    %63 = arith.subf %59, %62 : vector<16x16xf32>
    %64 = math.exp %63 : vector<16x16xf32>
    %cst_22 = arith.constant dense<0.000000e+00> : vector<16xf32>
    %65 = vector.multi_reduction <add>, %64, %cst_22 [1] : vector<16x16xf32> to vector<16xf32>
    %66 = vector.shape_cast %65 : vector<16xf32> to vector<16x1xf32>
    %cst_23 = arith.constant dense<0.000000e+00> : vector<16x8xf32>
    %67 = tpu.matmul %64, %57, %cst_23 {dimension_numbers = #tpu.dot_dimension_numbers<[1], [0], [0], [1], [0, 0, 1, 1], [], []>} : vector<16x16xf32>, vector<16x8xf32>, vector<16x8xf32> -> vector<16x8xf32>
    %68 = tpu.reciprocal %66 {approx = true} : vector<16x1xf32> -> vector<16x1xf32>
    %69 = vector.broadcast %68 : vector<16x1xf32> to vector<16x8xf32>
    %70 = arith.mulf %67, %69 : vector<16x8xf32>
    %c16 = arith.constant 16 : index
    %c128_24 = arith.constant 128 : index
    %71 = vector.load %arg2[%c16, %c128_24] : memref<64x512xf32, #tpu.memory_space<vmem>>, vector<8x32xf32>
    %cst_25 = arith.constant dense<0.000000e+00> : vector<16x32xf32>
    %72 = tpu.matmul %70, %71, %cst_25 {dimension_numbers = #tpu.dot_dimension_numbers<[1], [0], [0], [1], [0, 0, 1, 1], [], []>} : vector<16x8xf32>, vector<8x32xf32>, vector<16x32xf32> -> vector<16x32xf32>
    %73 = arith.addf %54, %72 : vector<16x32xf32>
    %74 = vector.extract_strided_slice %5 {offsets = [0, 24], sizes = [16, 8], strides = [1, 1]} : vector<16x96xf32> to vector<16x8xf32>
    %75 = vector.extract_strided_slice %5 {offsets = [0, 56], sizes = [16, 8], strides = [1, 1]} : vector<16x96xf32> to vector<16x8xf32>
    %76 = vector.extract_strided_slice %5 {offsets = [0, 88], sizes = [16, 8], strides = [1, 1]} : vector<16x96xf32> to vector<16x8xf32>
    %cst_26 = arith.constant dense<0.000000e+00> : vector<16x16xf32>
    %77 = tpu.matmul %74, %75, %cst_26 {dimension_numbers = #tpu.dot_dimension_numbers<[1], [1], [0], [0], [0, 0, 1, 0], [], []>} : vector<16x8xf32>, vector<16x8xf32>, vector<16x16xf32> -> vector<16x16xf32>
    %78 = arith.addf %77, %15 : vector<16x16xf32>
    %cst_27 = arith.constant dense<0xFF800000> : vector<16xf32>
    %79 = vector.multi_reduction <maximumf>, %78, %cst_27 [1] : vector<16x16xf32> to vector<16xf32>
    %80 = vector.shape_cast %79 : vector<16xf32> to vector<16x1xf32>
    %81 = vector.broadcast %80 : vector<16x1xf32> to vector<16x16xf32>
    %82 = arith.subf %78, %81 : vector<16x16xf32>
    %83 = math.exp %82 : vector<16x16xf32>
    %cst_28 = arith.constant dense<0.000000e+00> : vector<16xf32>
    %84 = vector.multi_reduction <add>, %83, %cst_28 [1] : vector<16x16xf32> to vector<16xf32>
    %85 = vector.shape_cast %84 : vector<16xf32> to vector<16x1xf32>
    %cst_29 = arith.constant dense<0.000000e+00> : vector<16x8xf32>
    %86 = tpu.matmul %83, %76, %cst_29 {dimension_numbers = #tpu.dot_dimension_numbers<[1], [0], [0], [1], [0, 0, 1, 1], [], []>} : vector<16x16xf32>, vector<16x8xf32>, vector<16x8xf32> -> vector<16x8xf32>
    %87 = tpu.reciprocal %85 {approx = true} : vector<16x1xf32> -> vector<16x1xf32>
    %88 = vector.broadcast %87 : vector<16x1xf32> to vector<16x8xf32>
    %89 = arith.mulf %86, %88 : vector<16x8xf32>
    %c24 = arith.constant 24 : index
    %c128_30 = arith.constant 128 : index
    %90 = vector.load %arg2[%c24, %c128_30] : memref<64x512xf32, #tpu.memory_space<vmem>>, vector<8x32xf32>
    %cst_31 = arith.constant dense<0.000000e+00> : vector<16x32xf32>
    %91 = tpu.matmul %89, %90, %cst_31 {dimension_numbers = #tpu.dot_dimension_numbers<[1], [0], [0], [1], [0, 0, 1, 1], [], []>} : vector<16x8xf32>, vector<8x32xf32>, vector<16x32xf32> -> vector<16x32xf32>
    %92 = arith.addf %73, %91 : vector<16x32xf32>
    %c1 = arith.constant 1 : index
    %c0_32 = arith.constant 0 : index
    %93 = vector.load %arg3[%c1, %c0_32] : memref<8x128xf32, #tpu.memory_space<vmem>>, vector<1x32xf32>
    %94 = vector.broadcast %93 : vector<1x32xf32> to vector<16x32xf32>
    %95 = arith.addf %92, %94 : vector<16x32xf32>
    %96 = arith.addf %0, %95 : vector<16x32xf32>
    %cst_33 = arith.constant dense<0.000000e+00> : vector<16xf32>
    %97 = vector.multi_reduction <add>, %96, %cst_33 [1] : vector<16x32xf32> to vector<16xf32>
    %98 = vector.shape_cast %97 : vector<16xf32> to vector<16x1xf32>
    %cst_34 = arith.constant 3.200000e+01 : f32
    %99 = vector.broadcast %cst_34 : f32 to vector<16x1xf32>
    %100 = arith.divf %98, %99 : vector<16x1xf32>
    %101 = vector.broadcast %100 : vector<16x1xf32> to vector<16x32xf32>
    %102 = arith.subf %96, %101 : vector<16x32xf32>
    %103 = arith.mulf %102, %102 : vector<16x32xf32>
    %cst_35 = arith.constant dense<0.000000e+00> : vector<16xf32>
    %104 = vector.multi_reduction <add>, %103, %cst_35 [1] : vector<16x32xf32> to vector<16xf32>
    %105 = vector.shape_cast %104 : vector<16xf32> to vector<16x1xf32>
    %cst_36 = arith.constant 3.200000e+01 : f32
    %106 = vector.broadcast %cst_36 : f32 to vector<16x1xf32>
    %107 = arith.divf %105, %106 : vector<16x1xf32>
    %108 = vector.broadcast %100 : vector<16x1xf32> to vector<16x32xf32>
    %109 = arith.subf %96, %108 : vector<16x32xf32>
    %cst_37 = arith.constant 9.99999974E-6 : f32
    %110 = vector.broadcast %cst_37 : f32 to vector<16x1xf32>
    %111 = arith.addf %107, %110 : vector<16x1xf32>
    %112 = math.rsqrt %111 : vector<16x1xf32>
    %113 = vector.broadcast %112 : vector<16x1xf32> to vector<16x32xf32>
    %114 = arith.mulf %109, %113 : vector<16x32xf32>
    %c4 = arith.constant 4 : index
    %c0_38 = arith.constant 0 : index
    %115 = vector.load %arg3[%c4, %c0_38] : memref<8x128xf32, #tpu.memory_space<vmem>>, vector<1x32xf32>
    %116 = vector.broadcast %115 : vector<1x32xf32> to vector<16x32xf32>
    %117 = arith.mulf %114, %116 : vector<16x32xf32>
    %c5 = arith.constant 5 : index
    %c0_39 = arith.constant 0 : index
    %118 = vector.load %arg3[%c5, %c0_39] : memref<8x128xf32, #tpu.memory_space<vmem>>, vector<1x32xf32>
    %119 = vector.broadcast %118 : vector<1x32xf32> to vector<16x32xf32>
    %120 = arith.addf %117, %119 : vector<16x32xf32>
    %c0_40 = arith.constant 0 : index
    %c256 = arith.constant 256 : index
    %121 = vector.load %arg2[%c0_40, %c256] : memref<64x512xf32, #tpu.memory_space<vmem>>, vector<32x64xf32>
    %cst_41 = arith.constant dense<0.000000e+00> : vector<16x64xf32>
    %122 = tpu.matmul %120, %121, %cst_41 {dimension_numbers = #tpu.dot_dimension_numbers<[1], [0], [0], [1], [0, 0, 1, 1], [], []>} : vector<16x32xf32>, vector<32x64xf32>, vector<16x64xf32> -> vector<16x64xf32>
    %c2 = arith.constant 2 : index
    %c0_42 = arith.constant 0 : index
    %123 = vector.load %arg3[%c2, %c0_42] : memref<8x128xf32, #tpu.memory_space<vmem>>, vector<1x64xf32>
    %124 = vector.broadcast %123 : vector<1x64xf32> to vector<16x64xf32>
    %125 = arith.addf %122, %124 : vector<16x64xf32>
    %cst_43 = arith.constant 0.000000e+00 : f32
    %126 = vector.broadcast %cst_43 : f32 to vector<16x64xf32>
    %127 = arith.maximumf %125, %126 : vector<16x64xf32>
    %c0_44 = arith.constant 0 : index
    %c384 = arith.constant 384 : index
    %128 = vector.load %arg2[%c0_44, %c384] : memref<64x512xf32, #tpu.memory_space<vmem>>, vector<64x32xf32>
    %cst_45 = arith.constant dense<0.000000e+00> : vector<16x32xf32>
    %129 = tpu.matmul %127, %128, %cst_45 {dimension_numbers = #tpu.dot_dimension_numbers<[1], [0], [0], [1], [0, 0, 1, 1], [], []>} : vector<16x64xf32>, vector<64x32xf32>, vector<16x32xf32> -> vector<16x32xf32>
    %c3 = arith.constant 3 : index
    %c0_46 = arith.constant 0 : index
    %130 = vector.load %arg3[%c3, %c0_46] : memref<8x128xf32, #tpu.memory_space<vmem>>, vector<1x32xf32>
    %131 = vector.broadcast %130 : vector<1x32xf32> to vector<16x32xf32>
    %132 = arith.addf %129, %131 : vector<16x32xf32>
    %133 = arith.addf %120, %132 : vector<16x32xf32>
    %cst_47 = arith.constant dense<0.000000e+00> : vector<16xf32>
    %134 = vector.multi_reduction <add>, %133, %cst_47 [1] : vector<16x32xf32> to vector<16xf32>
    %135 = vector.shape_cast %134 : vector<16xf32> to vector<16x1xf32>
    %cst_48 = arith.constant 3.200000e+01 : f32
    %136 = vector.broadcast %cst_48 : f32 to vector<16x1xf32>
    %137 = arith.divf %135, %136 : vector<16x1xf32>
    %138 = vector.broadcast %137 : vector<16x1xf32> to vector<16x32xf32>
    %139 = arith.subf %133, %138 : vector<16x32xf32>
    %140 = arith.mulf %139, %139 : vector<16x32xf32>
    %cst_49 = arith.constant dense<0.000000e+00> : vector<16xf32>
    %141 = vector.multi_reduction <add>, %140, %cst_49 [1] : vector<16x32xf32> to vector<16xf32>
    %142 = vector.shape_cast %141 : vector<16xf32> to vector<16x1xf32>
    %cst_50 = arith.constant 3.200000e+01 : f32
    %143 = vector.broadcast %cst_50 : f32 to vector<16x1xf32>
    %144 = arith.divf %142, %143 : vector<16x1xf32>
    %145 = vector.broadcast %137 : vector<16x1xf32> to vector<16x32xf32>
    %146 = arith.subf %133, %145 : vector<16x32xf32>
    %cst_51 = arith.constant 9.99999974E-6 : f32
    %147 = vector.broadcast %cst_51 : f32 to vector<16x1xf32>
    %148 = arith.addf %144, %147 : vector<16x1xf32>
    %149 = math.rsqrt %148 : vector<16x1xf32>
    %150 = vector.broadcast %149 : vector<16x1xf32> to vector<16x32xf32>
    %151 = arith.mulf %146, %150 : vector<16x32xf32>
    %c6 = arith.constant 6 : index
    %c0_52 = arith.constant 0 : index
    %152 = vector.load %arg3[%c6, %c0_52] : memref<8x128xf32, #tpu.memory_space<vmem>>, vector<1x32xf32>
    %153 = vector.broadcast %152 : vector<1x32xf32> to vector<16x32xf32>
    %154 = arith.mulf %151, %153 : vector<16x32xf32>
    %c7 = arith.constant 7 : index
    %c0_53 = arith.constant 0 : index
    %155 = vector.load %arg3[%c7, %c0_53] : memref<8x128xf32, #tpu.memory_space<vmem>>, vector<1x32xf32>
    %156 = vector.broadcast %155 : vector<1x32xf32> to vector<16x32xf32>
    %157 = arith.addf %154, %156 : vector<16x32xf32>
    %c0_54 = arith.constant 0 : index
    %c0_55 = arith.constant 0 : index
    %158 = vector.load %arg4[%c0_54, %c0_55] : memref<16x32xf32, #tpu.memory_space<vmem>>, vector<16x32xf32>
    tpu.vector_store %arg4[%c0_54, %c0_55], %157 {strides = array<i32>} : memref<16x32xf32, #tpu.memory_space<vmem>>, vector<16x32xf32>,
    return
  }
  func.func @transform_0(%arg0: i32) -> (i32, i32) {
    %c0_i32 = arith.constant 0 : i32
    %c0_i32_0 = arith.constant 0 : i32
    %c0_i32_1 = arith.constant 0 : i32
    return %c0_i32, %c0_i32_0 : i32, i32
  }
  func.func @transform_1(%arg0: i32) -> (i32, i32) {
    %c0_i32 = arith.constant 0 : i32
    %c0_i32_0 = arith.constant 0 : i32
    %c0_i32_1 = arith.constant 0 : i32
    return %c0_i32, %c0_i32_0 : i32, i32
  }
  func.func @transform_2(%arg0: i32) -> (i32, i32) {
    %c0_i32 = arith.constant 0 : i32
    %c0_i32_0 = arith.constant 0 : i32
    %c0_i32_1 = arith.constant 0 : i32
    return %c0_i32, %c0_i32_0 : i32, i32
  }
  func.func @transform_3(%arg0: i32) -> (i32, i32) {
    %c0_i32 = arith.constant 0 : i32
    %c0_i32_0 = arith.constant 0 : i32
    %c0_i32_1 = arith.constant 0 : i32
    return %c0_i32, %c0_i32_0 : i32, i32
  }
}

</mosaic_0001>

<llo_original>
// kernel: tpu_custom_call.1
$region0: #{tpu_custom_call.1}
  #allocation0 [shape = 'u32[]', space=smem, size = 0x4, offset = 0x4, fixed_abs, tag = 'smem constant byte address 0x4 - core index']
  #allocation1 [shape = 'u32[144,128]{1,0:T(1,128)}', space=vmem, size = 0x12000, scoped, tag = 'internal scratch']
  %s0 = inlined_call_operand.hbm [shape: f32[16,32], index: 0, kind: input, shape index: {}]
  %s1 = inlined_call_operand.hbm [shape: f32[64,512], index: 1, kind: input, shape index: {}]
  %s2 = inlined_call_operand.hbm [shape: f32[8,128], index: 2, kind: input, shape index: {}]
  %s3 = inlined_call_operand.hbm [shape: f32[16,32], index: 3, kind: output, shape index: {}]
  %s4 = sld [smem:[#allocation0]]
  $region34: #{tpu_custom_call.1} parent=0
    _
  %s6 = ssub.s32 1, %s4
  %s7 = scalar_select 0, %s6, %s4
  $region1: #{tpu_custom_call.1} parent=0
    #allocation2 [shape = 'u8[8192]{0}', space=vmem, size = 0x2000, scoped, tag = 'input window, operand 0, single buffered']
    #allocation3 [shape = 's32[1]{0}', space=sflag, size = 0x4, scoped, tag = 'scoped memory for tpu_custom_call.1']
    #allocation4 [shape = 's32[1]{0}', space=sflag, size = 0x4, scoped, tag = 'scoped memory for tpu_custom_call.1']
    #allocation5 [shape = 'u8[131072]{0}', space=vmem, size = 0x20000, scoped, tag = 'input window, operand 1, single buffered']
    #allocation6 [shape = 's32[1]{0}', space=sflag, size = 0x4, scoped, tag = 'scoped memory for tpu_custom_call.1']
    #allocation7 [shape = 'u8[4096]{0}', space=vmem, size = 0x1000, scoped, tag = 'input window, operand 2, single buffered']
    #allocation8 [shape = 'u8[8192]{0}', space=vmem, size = 0x2000, scoped, tag = 'output window, operand 0, single buffered']
    %8 = vsyncpa [#allocation3], 0
    %9 = vsyncpa [#allocation6], 0
    %10 = vsyncpa [#allocation4], 0
    // Predicated region
    $region2: #{tpu_custom_call.1} parent=1 // pred_check
      _
    $region3: #{tpu_custom_call.1} parent=1 // pred_check_branch
      %12 = sbr.rel (0) target = $region5
    $region4: #{tpu_custom_call.1} parent=1 // pred_region
      %s14 = ssub.s32 256, 256
      %15 = vsyncadd [#allocation3], %s14
      %s16 = sshll.u32 [#allocation2], 4
      %s17 = int_to_ptr.vmem [resolvable:$true] %s16
      %22 = dma.hbm_to_vmem [thread:$0]  %s0, 256, %s17, [#allocation3], 128, 128, 8
    $region5: #{tpu_custom_call.1} parent=1 // pred_fallthru
      _
    // Predicated region
    $region6: #{tpu_custom_call.1} parent=1 // pred_check
      _
    $region7: #{tpu_custom_call.1} parent=1 // pred_check_branch
      %24 = sbr.rel (0) target = $region9
    $region8: #{tpu_custom_call.1} parent=1 // pred_region
      %s26 = ssub.s32 4096, 4096
      %27 = vsyncadd [#allocation6], %s26
      %s28 = sshll.u32 [#allocation5], 4
      %s29 = int_to_ptr.vmem [resolvable:$true] %s28
      %34 = dma.hbm_to_vmem [thread:$0]  %s1, 4096, %s29, [#allocation6], 512, 512, 32
    $region9: #{tpu_custom_call.1} parent=1 // pred_fallthru
      _
    // Predicated region
    $region10: #{tpu_custom_call.1} parent=1 // pred_check
      _
    $region11: #{tpu_custom_call.1} parent=1 // pred_check_branch
      %36 = sbr.rel (0) target = $region13
    $region12: #{tpu_custom_call.1} parent=1 // pred_region
      %s38 = ssub.s32 128, 128
      %39 = vsyncadd [#allocation6], %s38
      %s41 = sshll.u32 [#allocation7], 4
      %s42 = int_to_ptr.vmem [resolvable:$true] %s41
      %44 = dma.hbm_to_vmem [thread:$0]  %s2, 128, %s42, [#allocation6]
    $region13: #{tpu_custom_call.1} parent=1 // pred_fallthru
      _
    // Predicated region
    $region14: #{tpu_custom_call.1} parent=1 // pred_check
      _
    $region15: #{tpu_custom_call.1} parent=1 // pred_check_branch
      %46 = sbr.rel (0) target = $region17
    $region16: #{tpu_custom_call.1} parent=1 // pred_region
      %47 = dma.done [#allocation3], 256
    $region17: #{tpu_custom_call.1} parent=1 // pred_fallthru
      _
    // Predicated region
    $region18: #{tpu_custom_call.1} parent=1 // pred_check
      _
    $region19: #{tpu_custom_call.1} parent=1 // pred_check_branch
      %49 = sbr.rel (0) target = $region21
    $region20: #{tpu_custom_call.1} parent=1 // pred_region
      %50 = dma.done [#allocation6], 4096
    $region21: #{tpu_custom_call.1} parent=1 // pred_fallthru
      _
    // Predicated region
    $region22: #{tpu_custom_call.1} parent=1 // pred_check
      _
    $region23: #{tpu_custom_call.1} parent=1 // pred_check_branch
      %52 = sbr.rel (0) target = $region25
    $region24: #{tpu_custom_call.1} parent=1 // pred_region
      %53 = dma.done [#allocation6], 128
    $region25: #{tpu_custom_call.1} parent=1 // pred_fallthru
      _
    %v54 = vld [vmem:[#allocation2] sm:$0xff]
    %v55 = vld [vmem:[#allocation2 + $0x8] sm:$0xff]
    %v56 = vld [vmem:[#allocation5] sm:$0xff]
    %v57 = vld [vmem:[#allocation5 + $0x20] sm:$0xff]
    %v58 = vld [vmem:[#allocation5 + $0x40] sm:$0xff]
    %v59 = vld [vmem:[#allocation5 + $0x60] sm:$0xff]
    %v60 = vld [vmem:[#allocation7] sm:$0x1]
    %v61 = vlaneseq
    %v62 = vshrl.u32 %v61, 7
    %v63 = vsub.s32 0, %v62
    %v64 = vrot.slane %v60, %v63
    %vm65 = vcmask 261120
    %v67 = vsel %vm65, %v54, 0
    %v70 = vsel %vm65, %v55, 0
    %72 = vmatprep.subr.mxu0 0.0
    %73 = vmatpush1.msra.mxu0 0.0
    %74 = vmatprep.subr.mxu0 0.0
    %75 = vmatpush1.msra.mxu0 0.0
    %76 = vmatprep.subr.mxu0 0.0
    %77 = vmatpush1.msra.mxu0 0.0
    %78 = vmatprep.subr.mxu0 0.0
    %79 = vmatpush1.msra.mxu0 0.0
    %80 = vmatprep.subr.mxu0 0.0
    %81 = vmatpush1.msra.mxu0 0.0
    %82 = vmatprep.subr.mxu0 0.0
    %83 = vmatpush1.msra.mxu0 0.0
    %84 = vmatprep.subr.mxu0 0.0
    %85 = vmatpush1.msra.mxu0 0.0
    %86 = vmatprep.subr.mxu0 0.0
    %87 = vmatpush1.msra.mxu0 0.0
    %88 = vmatprep.subr.mxu0 0.0
    %89 = vmatpush1.msra.mxu0 0.0
    %90 = vmatprep.subr.mxu0 0.0
    %91 = vmatpush1.msra.mxu0 0.0
    %92 = vmatprep.subr.mxu0 0.0
    %93 = vmatpush1.msra.mxu0 0.0
    %94 = vmatprep.subr.mxu0 0.0
    %95 = vmatpush1.msra.mxu0 0.0
    %96 = vmatprep.subr.mxu0 0.0
    %97 = vmatpush1.msra.mxu0 %v59
    %98 = vmatprep.subr.mxu0 0.0
    %99 = vmatpush1.msra.mxu0 %v58
    %100 = vmatprep.subr.mxu0 0.0
    %101 = vmatpush1.msra.mxu0 %v57
    %102 = vmatprep.subr.mxu0 0.0
    %103 = vmatpush1.msra.mxu0 %v56
    %104 = vmatprep.subr.mxu0 0.0
    %105 = vmatpush2.msra.mxu0 0.0
    %106 = vmatprep.subr.mxu0 0.0
    %107 = vmatpush2.msra.mxu0 0.0
    %108 = vmatprep.subr.mxu0 0.0
    %109 = vmatpush2.msra.mxu0 0.0
    %110 = vmatprep.subr.mxu0 0.0
    %111 = vmatpush2.msra.mxu0 0.0
    %112 = vmatprep.subr.mxu0 0.0
    %113 = vmatpush2.msra.mxu0 0.0
    %114 = vmatprep.subr.mxu0 0.0
    %115 = vmatpush2.msra.mxu0 0.0
    %116 = vmatprep.subr.mxu0 0.0
    %117 = vmatpush2.msra.mxu0 0.0
    %118 = vmatprep.subr.mxu0 0.0
    %119 = vmatpush2.msra.mxu0 0.0
    %120 = vmatprep.subr.mxu0 0.0
    %121 = vmatpush2.msra.mxu0 0.0
    %122 = vmatprep.subr.mxu0 0.0
    %123 = vmatpush2.msra.mxu0 0.0
    %124 = vmatprep.subr.mxu0 0.0
    %125 = vmatpush2.msra.mxu0 0.0
    %126 = vmatprep.subr.mxu0 0.0
    %127 = vmatpush2.msra.mxu0 0.0
    %128 = vmatprep.subr.mxu0 0.0
    %129 = vmatpush2.msra.mxu0 0.0
    %130 = vmatprep.subr.mxu0 0.0
    %131 = vmatpush2.msra.mxu0 0.0
    %132 = vmatprep.subr.mxu0 0.0
    %133 = vmatpush2.msra.mxu0 0.0
    %134 = vmatprep.subr.mxu0 0.0
    %135 = vmatpush2.msra.mxu0 0.0
    %136 = vmatprep.mubr.f32.mxu0 0.0
    %137 = vmatmul.mubr.f32.gmra.mxu0 %v67
    %v138 = vpop.f32.mrf.mxu0
    %v139 = vadd.f32 %v64, %v138
    %v140 = vpop.f32.mrf.mxu0
    %141 = vmatprep.mubr.f32.mxu0 0.0
    %142 = vmatmul.mubr.f32.gmra.mxu0 %v70
    %v143 = vpop.f32.mrf.mxu0
    %v144 = vadd.f32 %v64, %v143
    %v145 = vpop.f32.mrf.mxu0
    %146 = vdwg.mxu0
    %v147 = vlaneseq
    %v148 = vshrl.u32 %v147, 7
    %v149 = vadd.s32 %v148, 8
    %v150 = vlaneseq
    %v151 = vand.u32 %v150, 127
    %v152 = vxor.u32 %v148, %v151
    %v153 = vxor.u32 %v149, %v151
    %v154 = vand.u32 %v152, 1
    %v155 = vand.u32 %v153, 1
    %vm156 = vcmp.eq.s32.totalorder %v154, 0
    %vm157 = vcmp.eq.s32.totalorder %v155, 0
    %v158 = vsel %vm156, 0.0, -1e+30
    %v159 = vsel %vm157, 0.0, -1e+30
    %162 = vrot.lane.b32.xlu0 %v139, 96
    %v163 = vpop.permute.xlu0 %162
    %164 = vrot.lane.b32.xlu0 %v144, 96
    %v165 = vpop.permute.xlu0 %164
    %vm166 = vcmask 64512
    %v167 = vsel %vm166, %v139, 0
    %v169 = vsel %vm166, %v144, 0
    %v171 = vsel %vm166, %v163, 0
    %v173 = vsel %vm166, %v165, 0
    %175 = vmatprep.subr.mxu0 0.0
    %176 = vmatpush1.xpose.msra.mxu0 0.0
    %177 = vmatprep.subr.mxu0 0.0
    %178 = vmatpush1.xpose.msra.mxu0 0.0
    %179 = vmatprep.subr.mxu0 0.0
    %180 = vmatpush1.xpose.msra.mxu0 0.0
    %181 = vmatprep.subr.mxu0 0.0
    %182 = vmatpush1.xpose.msra.mxu0 0.0
    %183 = vmatprep.subr.mxu0 0.0
    %184 = vmatpush1.xpose.msra.mxu0 0.0
    %185 = vmatprep.subr.mxu0 0.0
    %186 = vmatpush1.xpose.msra.mxu0 0.0
    %187 = vmatprep.subr.mxu0 0.0
    %188 = vmatpush1.xpose.msra.mxu0 0.0
    %189 = vmatprep.subr.mxu0 0.0
    %190 = vmatpush1.xpose.msra.mxu0 0.0
    %191 = vmatprep.subr.mxu0 0.0
    %192 = vmatpush1.xpose.msra.mxu0 0.0
    %193 = vmatprep.subr.mxu0 0.0
    %194 = vmatpush1.xpose.msra.mxu0 0.0
    %195 = vmatprep.subr.mxu0 0.0
    %196 = vmatpush1.xpose.msra.mxu0 0.0
    %197 = vmatprep.subr.mxu0 0.0
    %198 = vmatpush1.xpose.msra.mxu0 0.0
    %199 = vmatprep.subr.mxu0 0.0
    %200 = vmatpush1.xpose.msra.mxu0 0.0
    %201 = vmatprep.subr.mxu0 0.0
    %202 = vmatpush1.xpose.msra.mxu0 0.0
    %203 = vmatprep.subr.mxu0 0.0
    %204 = vmatpush1.xpose.msra.mxu0 %v173
    %205 = vmatprep.subr.mxu0 0.0
    %206 = vmatpush1.xpose.msra.mxu0 %v171
    %207 = vmatprep.subr.mxu0 0.0
    %208 = vmatpush2.xpose.msra.mxu0 0.0
    %209 = vmatprep.subr.mxu0 0.0
    %210 = vmatpush2.xpose.msra.mxu0 0.0
    %211 = vmatprep.subr.mxu0 0.0
    %212 = vmatpush2.xpose.msra.mxu0 0.0
    %213 = vmatprep.subr.mxu0 0.0
    %214 = vmatpush2.xpose.msra.mxu0 0.0
    %215 = vmatprep.subr.mxu0 0.0
    %216 = vmatpush2.xpose.msra.mxu0 0.0
    %217 = vmatprep.subr.mxu0 0.0
    %218 = vmatpush2.xpose.msra.mxu0 0.0
    %219 = vmatprep.subr.mxu0 0.0
    %220 = vmatpush2.xpose.msra.mxu0 0.0
    %221 = vmatprep.subr.mxu0 0.0
    %222 = vmatpush2.xpose.msra.mxu0 0.0
    %223 = vmatprep.subr.mxu0 0.0
    %224 = vmatpush2.xpose.msra.mxu0 0.0
    %225 = vmatprep.subr.mxu0 0.0
    %226 = vmatpush2.xpose.msra.mxu0 0.0
    %227 = vmatprep.subr.mxu0 0.0
    %228 = vmatpush2.xpose.msra.mxu0 0.0
    %229 = vmatprep.subr.mxu0 0.0
    %230 = vmatpush2.xpose.msra.mxu0 0.0
    %231 = vmatprep.subr.mxu0 0.0
    %232 = vmatpush2.xpose.msra.mxu0 0.0
    %233 = vmatprep.subr.mxu0 0.0
    %234 = vmatpush2.xpose.msra.mxu0 0.0
    %235 = vmatprep.subr.mxu0 0.0
    %236 = vmatpush2.xpose.msra.mxu0 0.0
    %237 = vmatprep.subr.mxu0 0.0
    %238 = vmatpush2.xpose.msra.mxu0 0.0
    %239 = vmatprep.mubr.f32.mxu0 0.0
    %240 = vmatmul.mubr.f32.gmra.mxu0 %v167
    %v241 = vpop.f32.mrf.mxu0
    %v242 = vadd.f32 %v158, %v241
    %v243 = vpop.f32.mrf.mxu0
    %244 = vmatprep.mubr.f32.mxu0 0.0
    %245 = vmatmul.mubr.f32.gmra.mxu0 %v169
    %v246 = vpop.f32.mrf.mxu0
    %v247 = vadd.f32 %v159, %v246
    %v248 = vpop.f32.mrf.mxu0
    %249 = vdwg.mxu0
    %vm250 = vcmask 130048
    %v251 = vsel %vm250, %v242, -inf
    %252 = vmax.xlane.f32.xlu0 %v251
    %v253 = vpop.xlane.xlu0 %252
    %v254 = vsel %vm250, %v247, -inf
    %255 = vmax.xlane.f32.xlu0 %v254
    %v256 = vpop.xlane.xlu0 %255
    %v257 = vsub.f32 %v242, %v253
    %v258 = vsub.f32 %v247, %v256
    %v259 = vmul.f32 %v257, 1.442695
    %v260 = vpow.pop %v259
    %v261 = vmul.f32 %v258, 1.442695
    %v262 = vpow.pop %v261
    %v263 = vsel %vm250, %v260, 0.0
    %264 = vadd.xlane.f32.xlu0 %v263
    %v265 = vpop.xlane.xlu0 %264
    %v266 = vsel %vm250, %v262, 0.0
    %267 = vadd.xlane.f32.xlu0 %v266
    %v268 = vpop.xlane.xlu0 %267
    %269 = vrot.lane.b32.xlu0 %v139, 64
    %v270 = vpop.permute.xlu0 %269
    %271 = vrot.lane.b32.xlu0 %v144, 64
    %v272 = vpop.permute.xlu0 %271
    %v276 = vsel %vm250, %v260, 0
    %v279 = vsel %vm250, %v262, 0
    %281 = vmatprep.subr.mxu0 0.0
    %282 = vmatpush1.msra.mxu0 0.0
    %283 = vmatprep.subr.mxu0 0.0
    %284 = vmatpush1.msra.mxu0 0.0
    %285 = vmatprep.subr.mxu0 0.0
    %286 = vmatpush1.msra.mxu0 0.0
    %287 = vmatprep.subr.mxu0 0.0
    %288 = vmatpush1.msra.mxu0 0.0
    %289 = vmatprep.subr.mxu0 0.0
    %290 = vmatpush1.msra.mxu0 0.0
    %291 = vmatprep.subr.mxu0 0.0
    %292 = vmatpush1.msra.mxu0 0.0
    %293 = vmatprep.subr.mxu0 0.0
    %294 = vmatpush1.msra.mxu0 0.0
    %295 = vmatprep.subr.mxu0 0.0
    %296 = vmatpush1.msra.mxu0 0.0
    %297 = vmatprep.subr.mxu0 0.0
    %298 = vmatpush1.msra.mxu0 0.0
    %299 = vmatprep.subr.mxu0 0.0
    %300 = vmatpush1.msra.mxu0 0.0
    %301 = vmatprep.subr.mxu0 0.0
    %302 = vmatpush1.msra.mxu0 0.0
    %303 = vmatprep.subr.mxu0 0.0
    %304 = vmatpush1.msra.mxu0 0.0
    %305 = vmatprep.subr.mxu0 0.0
    %306 = vmatpush1.msra.mxu0 0.0
    %307 = vmatprep.subr.mxu0 0.0
    %308 = vmatpush1.msra.mxu0 0.0
    %309 = vmatprep.subr.mxu0 0.0
    %310 = vmatpush1.msra.mxu0 %v272
    %311 = vmatprep.subr.mxu0 0.0
    %312 = vmatpush1.msra.mxu0 %v270
    %313 = vmatprep.subr.mxu0 0.0
    %314 = vmatpush2.msra.mxu0 0.0
    %315 = vmatprep.subr.mxu0 0.0
    %316 = vmatpush2.msra.mxu0 0.0
    %317 = vmatprep.subr.mxu0 0.0
    %318 = vmatpush2.msra.mxu0 0.0
    %319 = vmatprep.subr.mxu0 0.0
    %320 = vmatpush2.msra.mxu0 0.0
    %321 = vmatprep.subr.mxu0 0.0
    %322 = vmatpush2.msra.mxu0 0.0
    %323 = vmatprep.subr.mxu0 0.0
    %324 = vmatpush2.msra.mxu0 0.0
    %325 = vmatprep.subr.mxu0 0.0
    %326 = vmatpush2.msra.mxu0 0.0
    %327 = vmatprep.subr.mxu0 0.0
    %328 = vmatpush2.msra.mxu0 0.0
    %329 = vmatprep.subr.mxu0 0.0
    %330 = vmatpush2.msra.mxu0 0.0
    %331 = vmatprep.subr.mxu0 0.0
    %332 = vmatpush2.msra.mxu0 0.0
    %333 = vmatprep.subr.mxu0 0.0
    %334 = vmatpush2.msra.mxu0 0.0
    %335 = vmatprep.subr.mxu0 0.0
    %336 = vmatpush2.msra.mxu0 0.0
    %337 = vmatprep.subr.mxu0 0.0
    %338 = vmatpush2.msra.mxu0 0.0
    %339 = vmatprep.subr.mxu0 0.0
    %340 = vmatpush2.msra.mxu0 0.0
    %341 = vmatprep.subr.mxu0 0.0
    %342 = vmatpush2.msra.mxu0 0.0
    %343 = vmatprep.subr.mxu0 0.0
    %344 = vmatpush2.msra.mxu0 0.0
    %345 = vmatprep.mubr.f32.mxu0 0.0
    %346 = vmatmul.mubr.f32.gmra.mxu0 %v276
    %v347 = vpop.f32.mrf.mxu0
    %v348 = vadd.f32 0.0, %v347
    %v349 = vpop.f32.mrf.mxu0
    %350 = vmatprep.mubr.f32.mxu0 0.0
    %351 = vmatmul.mubr.f32.gmra.mxu0 %v279
    %v352 = vpop.f32.mrf.mxu0
    %v353 = vadd.f32 0.0, %v352
    %v354 = vpop.f32.mrf.mxu0
    %355 = vdwg.mxu0
    %v356 = vrcp.pop %v265
    %v357 = vrcp.pop %v268
    %v358 = vmul.f32 %v348, %v356
    %v359 = vmul.f32 %v353, %v357
    %v360 = vld [vmem:[#allocation5 + $0x8] sm:$0xff]
    %361 = vrot.lane.b32.xlu0 %v139, 120
    %v362 = vpop.permute.xlu0 %361
    %363 = vrot.lane.b32.xlu0 %v144, 120
    %v364 = vpop.permute.xlu0 %363
    %365 = vrot.lane.b32.xlu0 %v139, 88
    %v366 = vpop.permute.xlu0 %365
    %367 = vrot.lane.b32.xlu0 %v144, 88
    %v368 = vpop.permute.xlu0 %367
    %v369 = vsel %vm166, %v362, 0
    %v371 = vsel %vm166, %v364, 0
    %v373 = vsel %vm166, %v366, 0
    %v375 = vsel %vm166, %v368, 0
    %377 = vmatprep.subr.mxu0 0.0
    %378 = vmatpush1.xpose.msra.mxu0 0.0
    %379 = vmatprep.subr.mxu0 0.0
    %380 = vmatpush1.xpose.msra.mxu0 0.0
    %381 = vmatprep.subr.mxu0 0.0
    %382 = vmatpush1.xpose.msra.mxu0 0.0
    %383 = vmatprep.subr.mxu0 0.0
    %384 = vmatpush1.xpose.msra.mxu0 0.0
    %385 = vmatprep.subr.mxu0 0.0
    %386 = vmatpush1.xpose.msra.mxu0 0.0
    %387 = vmatprep.subr.mxu0 0.0
    %388 = vmatpush1.xpose.msra.mxu0 0.0
    %389 = vmatprep.subr.mxu0 0.0
    %390 = vmatpush1.xpose.msra.mxu0 0.0
    %391 = vmatprep.subr.mxu0 0.0
    %392 = vmatpush1.xpose.msra.mxu0 0.0
    %393 = vmatprep.subr.mxu0 0.0
    %394 = vmatpush1.xpose.msra.mxu0 0.0
    %395 = vmatprep.subr.mxu0 0.0
    %396 = vmatpush1.xpose.msra.mxu0 0.0
    %397 = vmatprep.subr.mxu0 0.0
    %398 = vmatpush1.xpose.msra.mxu0 0.0
    %399 = vmatprep.subr.mxu0 0.0
    %400 = vmatpush1.xpose.msra.mxu0 0.0
    %401 = vmatprep.subr.mxu0 0.0
    %402 = vmatpush1.xpose.msra.mxu0 0.0
    %403 = vmatprep.subr.mxu0 0.0
    %404 = vmatpush1.xpose.msra.mxu0 0.0
    %405 = vmatprep.subr.mxu0 0.0
    %406 = vmatpush1.xpose.msra.mxu0 %v375
    %407 = vmatprep.subr.mxu0 0.0
    %408 = vmatpush1.xpose.msra.mxu0 %v373
    %409 = vmatprep.subr.mxu0 0.0
    %410 = vmatpush2.xpose.msra.mxu0 0.0
    %411 = vmatprep.subr.mxu0 0.0
    %412 = vmatpush2.xpose.msra.mxu0 0.0
    %413 = vmatprep.subr.mxu0 0.0
    %414 = vmatpush2.xpose.msra.mxu0 0.0
    %415 = vmatprep.subr.mxu0 0.0
    %416 = vmatpush2.xpose.msra.mxu0 0.0
    %417 = vmatprep.subr.mxu0 0.0
    %418 = vmatpush2.xpose.msra.mxu0 0.0
    %419 = vmatprep.subr.mxu0 0.0
    %420 = vmatpush2.xpose.msra.mxu0 0.0
    %421 = vmatprep.subr.mxu0 0.0
    %422 = vmatpush2.xpose.msra.mxu0 0.0
    %423 = vmatprep.subr.mxu0 0.0
    %424 = vmatpush2.xpose.msra.mxu0 0.0
    %425 = vmatprep.subr.mxu0 0.0
    %426 = vmatpush2.xpose.msra.mxu0 0.0
    %427 = vmatprep.subr.mxu0 0.0
    %428 = vmatpush2.xpose.msra.mxu0 0.0
    %429 = vmatprep.subr.mxu0 0.0
    %430 = vmatpush2.xpose.msra.mxu0 0.0
    %431 = vmatprep.subr.mxu0 0.0
    %432 = vmatpush2.xpose.msra.mxu0 0.0
    %433 = vmatprep.subr.mxu0 0.0
    %434 = vmatpush2.xpose.msra.mxu0 0.0
    %435 = vmatprep.subr.mxu0 0.0
    %436 = vmatpush2.xpose.msra.mxu0 0.0
    %437 = vmatprep.subr.mxu0 0.0
    %438 = vmatpush2.xpose.msra.mxu0 0.0
    %439 = vmatprep.subr.mxu0 0.0
    %440 = vmatpush2.xpose.msra.mxu0 0.0
    %441 = vmatprep.mubr.f32.mxu0 0.0
    %442 = vmatmul.mubr.f32.gmra.mxu0 %v369
    %v443 = vpop.f32.mrf.mxu0
    %v444 = vadd.f32 %v158, %v443
    %v445 = vpop.f32.mrf.mxu0
    %446 = vmatprep.mubr.f32.mxu0 0.0
    %447 = vmatmul.mubr.f32.gmra.mxu0 %v371
    %v448 = vpop.f32.mrf.mxu0
    %v449 = vadd.f32 %v159, %v448
    %v450 = vpop.f32.mrf.mxu0
    %451 = vdwg.mxu0
    %v452 = vsel %vm250, %v444, -inf
    %453 = vmax.xlane.f32.xlu0 %v452
    %v454 = vpop.xlane.xlu0 %453
    %v455 = vsel %vm250, %v449, -inf
    %456 = vmax.xlane.f32.xlu0 %v455
    %v457 = vpop.xlane.xlu0 %456
    %v458 = vsub.f32 %v444, %v454
    %v459 = vsub.f32 %v449, %v457
    %v460 = vmul.f32 %v458, 1.442695
    %v461 = vpow.pop %v460
    %v462 = vmul.f32 %v459, 1.442695
    %v463 = vpow.pop %v462
    %v464 = vsel %vm250, %v461, 0.0
    %465 = vadd.xlane.f32.xlu0 %v464
    %v466 = vpop.xlane.xlu0 %465
    %v467 = vsel %vm250, %v463, 0.0
    %468 = vadd.xlane.f32.xlu0 %v467
    %v469 = vpop.xlane.xlu0 %468
    %470 = vrot.lane.b32.xlu0 %v139, 56
    %v471 = vpop.permute.xlu0 %470
    %472 = vrot.lane.b32.xlu0 %v144, 56
    %v473 = vpop.permute.xlu0 %472
    %v477 = vsel %vm250, %v461, 0
    %v480 = vsel %vm250, %v463, 0
    %482 = vmatprep.subr.mxu0 0.0
    %483 = vmatpush1.msra.mxu0 0.0
    %484 = vmatprep.subr.mxu0 0.0
    %485 = vmatpush1.msra.mxu0 0.0
    %486 = vmatprep.subr.mxu0 0.0
    %487 = vmatpush1.msra.mxu0 0.0
    %488 = vmatprep.subr.mxu0 0.0
    %489 = vmatpush1.msra.mxu0 0.0
    %490 = vmatprep.subr.mxu0 0.0
    %491 = vmatpush1.msra.mxu0 0.0
    %492 = vmatprep.subr.mxu0 0.0
    %493 = vmatpush1.msra.mxu0 0.0
    %494 = vmatprep.subr.mxu0 0.0
    %495 = vmatpush1.msra.mxu0 0.0
    %496 = vmatprep.subr.mxu0 0.0
    %497 = vmatpush1.msra.mxu0 0.0
    %498 = vmatprep.subr.mxu0 0.0
    %499 = vmatpush1.msra.mxu0 0.0
    %500 = vmatprep.subr.mxu0 0.0
    %501 = vmatpush1.msra.mxu0 0.0
    %502 = vmatprep.subr.mxu0 0.0
    %503 = vmatpush1.msra.mxu0 0.0
    %504 = vmatprep.subr.mxu0 0.0
    %505 = vmatpush1.msra.mxu0 0.0
    %506 = vmatprep.subr.mxu0 0.0
    %507 = vmatpush1.msra.mxu0 0.0
    %508 = vmatprep.subr.mxu0 0.0
    %509 = vmatpush1.msra.mxu0 0.0
    %510 = vmatprep.subr.mxu0 0.0
    %511 = vmatpush1.msra.mxu0 %v473
    %512 = vmatprep.subr.mxu0 0.0
    %513 = vmatpush1.msra.mxu0 %v471
    %514 = vmatprep.subr.mxu0 0.0
    %515 = vmatpush2.msra.mxu0 0.0
    %516 = vmatprep.subr.mxu0 0.0
    %517 = vmatpush2.msra.mxu0 0.0
    %518 = vmatprep.subr.mxu0 0.0
    %519 = vmatpush2.msra.mxu0 0.0
    %520 = vmatprep.subr.mxu0 0.0
    %521 = vmatpush2.msra.mxu0 0.0
    %522 = vmatprep.subr.mxu0 0.0
    %523 = vmatpush2.msra.mxu0 0.0
    %524 = vmatprep.subr.mxu0 0.0
    %525 = vmatpush2.msra.mxu0 0.0
    %526 = vmatprep.subr.mxu0 0.0
    %527 = vmatpush2.msra.mxu0 0.0
    %528 = vmatprep.subr.mxu0 0.0
    %529 = vmatpush2.msra.mxu0 0.0
    %530 = vmatprep.subr.mxu0 0.0
    %531 = vmatpush2.msra.mxu0 0.0
    %532 = vmatprep.subr.mxu0 0.0
    %533 = vmatpush2.msra.mxu0 0.0
    %534 = vmatprep.subr.mxu0 0.0
    %535 = vmatpush2.msra.mxu0 0.0
    %536 = vmatprep.subr.mxu0 0.0
    %537 = vmatpush2.msra.mxu0 0.0
    %538 = vmatprep.subr.mxu0 0.0
    %539 = vmatpush2.msra.mxu0 0.0
    %540 = vmatprep.subr.mxu0 0.0
    %541 = vmatpush2.msra.mxu0 0.0
    %542 = vmatprep.subr.mxu0 0.0
    %543 = vmatpush2.msra.mxu0 0.0
    %544 = vmatprep.subr.mxu0 0.0
    %545 = vmatpush2.msra.mxu0 0.0
    %546 = vmatprep.mubr.f32.mxu0 0.0
    %547 = vmatmul.mubr.f32.gmra.mxu0 %v477
    %v548 = vpop.f32.mrf.mxu0
    %v549 = vadd.f32 0.0, %v548
    %v550 = vpop.f32.mrf.mxu0
    %551 = vmatprep.mubr.f32.mxu0 0.0
    %552 = vmatmul.mubr.f32.gmra.mxu0 %v480
    %v553 = vpop.f32.mrf.mxu0
    %v554 = vadd.f32 0.0, %v553
    %v555 = vpop.f32.mrf.mxu0
    %556 = vdwg.mxu0
    %v557 = vrcp.pop %v466
    %v558 = vrcp.pop %v469
    %v559 = vmul.f32 %v549, %v557
    %v560 = vmul.f32 %v554, %v558
    %v561 = vld [vmem:[#allocation5 + $0x28] sm:$0xff]
    %v563 = vsel %vm166, %v559, 0
    %v566 = vsel %vm166, %v560, 0
    %568 = vmatprep.subr.mxu0 0.0
    %569 = vmatpush1.msra.mxu0 0.0
    %570 = vmatprep.subr.mxu0 0.0
    %571 = vmatpush1.msra.mxu0 0.0
    %572 = vmatprep.subr.mxu0 0.0
    %573 = vmatpush1.msra.mxu0 0.0
    %574 = vmatprep.subr.mxu0 0.0
    %575 = vmatpush1.msra.mxu0 0.0
    %576 = vmatprep.subr.mxu0 0.0
    %577 = vmatpush1.msra.mxu0 0.0
    %578 = vmatprep.subr.mxu0 0.0
    %579 = vmatpush1.msra.mxu0 0.0
    %580 = vmatprep.subr.mxu0 0.0
    %581 = vmatpush1.msra.mxu0 0.0
    %582 = vmatprep.subr.mxu0 0.0
    %583 = vmatpush1.msra.mxu0 0.0
    %584 = vmatprep.subr.mxu0 0.0
    %585 = vmatpush1.msra.mxu0 0.0
    %586 = vmatprep.subr.mxu0 0.0
    %587 = vmatpush1.msra.mxu0 0.0
    %588 = vmatprep.subr.mxu0 0.0
    %589 = vmatpush1.msra.mxu0 0.0
    %590 = vmatprep.subr.mxu0 0.0
    %591 = vmatpush1.msra.mxu0 0.0
    %592 = vmatprep.subr.mxu0 0.0
    %593 = vmatpush1.msra.mxu0 0.0
    %594 = vmatprep.subr.mxu0 0.0
    %595 = vmatpush1.msra.mxu0 0.0
    %596 = vmatprep.subr.mxu0 0.0
    %597 = vmatpush1.msra.mxu0 0.0
    %598 = vmatprep.subr.mxu0 0.0
    %599 = vmatpush1.msra.mxu0 %v561
    %600 = vmatprep.subr.mxu0 0.0
    %601 = vmatpush2.msra.mxu0 0.0
    %602 = vmatprep.subr.mxu0 0.0
    %603 = vmatpush2.msra.mxu0 0.0
    %604 = vmatprep.subr.mxu0 0.0
    %605 = vmatpush2.msra.mxu0 0.0
    %606 = vmatprep.subr.mxu0 0.0
    %607 = vmatpush2.msra.mxu0 0.0
    %608 = vmatprep.subr.mxu0 0.0
    %609 = vmatpush2.msra.mxu0 0.0
    %610 = vmatprep.subr.mxu0 0.0
    %611 = vmatpush2.msra.mxu0 0.0
    %612 = vmatprep.subr.mxu0 0.0
    %613 = vmatpush2.msra.mxu0 0.0
    %614 = vmatprep.subr.mxu0 0.0
    %615 = vmatpush2.msra.mxu0 0.0
    %616 = vmatprep.subr.mxu0 0.0
    %617 = vmatpush2.msra.mxu0 0.0
    %618 = vmatprep.subr.mxu0 0.0
    %619 = vmatpush2.msra.mxu0 0.0
    %620 = vmatprep.subr.mxu0 0.0
    %621 = vmatpush2.msra.mxu0 0.0
    %622 = vmatprep.subr.mxu0 0.0
    %623 = vmatpush2.msra.mxu0 0.0
    %624 = vmatprep.subr.mxu0 0.0
    %625 = vmatpush2.msra.mxu0 0.0
    %626 = vmatprep.subr.mxu0 0.0
    %627 = vmatpush2.msra.mxu0 0.0
    %628 = vmatprep.subr.mxu0 0.0
    %629 = vmatpush2.msra.mxu0 0.0
    %630 = vmatprep.subr.mxu0 0.0
    %631 = vmatpush2.msra.mxu0 0.0
    %632 = vmatprep.mubr.f32.mxu0 0.0
    %633 = vmatmul.mubr.f32.gmra.mxu0 %v563
    %v634 = vpop.f32.mrf.mxu0
    %v635 = vadd.f32 0.0, %v634
    %v636 = vpop.f32.mrf.mxu0
    %637 = vmatprep.mubr.f32.mxu0 0.0
    %638 = vmatmul.mubr.f32.gmra.mxu0 %v566
    %v639 = vpop.f32.mrf.mxu0
    %v640 = vadd.f32 0.0, %v639
    %v641 = vpop.f32.mrf.mxu0
    %642 = vdwg.mxu0
    %v644 = vsel %vm166, %v358, 0
    %v647 = vsel %vm166, %v359, 0
    %649 = vmatprep.subr.mxu0 0.0
    %650 = vmatpush1.msra.mxu0 0.0
    %651 = vmatprep.subr.mxu0 0.0
    %652 = vmatpush1.msra.mxu0 0.0
    %653 = vmatprep.subr.mxu0 0.0
    %654 = vmatpush1.msra.mxu0 0.0
    %655 = vmatprep.subr.mxu0 0.0
    %656 = vmatpush1.msra.mxu0 0.0
    %657 = vmatprep.subr.mxu0 0.0
    %658 = vmatpush1.msra.mxu0 0.0
    %659 = vmatprep.subr.mxu0 0.0
    %660 = vmatpush1.msra.mxu0 0.0
    %661 = vmatprep.subr.mxu0 0.0
    %662 = vmatpush1.msra.mxu0 0.0
    %663 = vmatprep.subr.mxu0 0.0
    %664 = vmatpush1.msra.mxu0 0.0
    %665 = vmatprep.subr.mxu0 0.0
    %666 = vmatpush1.msra.mxu0 0.0
    %667 = vmatprep.subr.mxu0 0.0
    %668 = vmatpush1.msra.mxu0 0.0
    %669 = vmatprep.subr.mxu0 0.0
    %670 = vmatpush1.msra.mxu0 0.0
    %671 = vmatprep.subr.mxu0 0.0
    %672 = vmatpush1.msra.mxu0 0.0
    %673 = vmatprep.subr.mxu0 0.0
    %674 = vmatpush1.msra.mxu0 0.0
    %675 = vmatprep.subr.mxu0 0.0
    %676 = vmatpush1.msra.mxu0 0.0
    %677 = vmatprep.subr.mxu0 0.0
    %678 = vmatpush1.msra.mxu0 0.0
    %679 = vmatprep.subr.mxu0 0.0
    %680 = vmatpush1.msra.mxu0 %v360
    %681 = vmatprep.subr.mxu0 0.0
    %682 = vmatpush2.msra.mxu0 0.0
    %683 = vmatprep.subr.mxu0 0.0
    %684 = vmatpush2.msra.mxu0 0.0
    %685 = vmatprep.subr.mxu0 0.0
    %686 = vmatpush2.msra.mxu0 0.0
    %687 = vmatprep.subr.mxu0 0.0
    %688 = vmatpush2.msra.mxu0 0.0
    %689 = vmatprep.subr.mxu0 0.0
    %690 = vmatpush2.msra.mxu0 0.0
    %691 = vmatprep.subr.mxu0 0.0
    %692 = vmatpush2.msra.mxu0 0.0
    %693 = vmatprep.subr.mxu0 0.0
    %694 = vmatpush2.msra.mxu0 0.0
    %695 = vmatprep.subr.mxu0 0.0
    %696 = vmatpush2.msra.mxu0 0.0
    %697 = vmatprep.subr.mxu0 0.0
    %698 = vmatpush2.msra.mxu0 0.0
    %699 = vmatprep.subr.mxu0 0.0
    %700 = vmatpush2.msra.mxu0 0.0
    %701 = vmatprep.subr.mxu0 0.0
    %702 = vmatpush2.msra.mxu0 0.0
    %703 = vmatprep.subr.mxu0 0.0
    %704 = vmatpush2.msra.mxu0 0.0
    %705 = vmatprep.subr.mxu0 0.0
    %706 = vmatpush2.msra.mxu0 0.0
    %707 = vmatprep.subr.mxu0 0.0
    %708 = vmatpush2.msra.mxu0 0.0
    %709 = vmatprep.subr.mxu0 0.0
    %710 = vmatpush2.msra.mxu0 0.0
    %711 = vmatprep.subr.mxu0 0.0
    %712 = vmatpush2.msra.mxu0 0.0
    %713 = vmatprep.mubr.f32.mxu0 0.0
    %714 = vmatmul.mubr.f32.gmra.mxu0 %v644
    %v715 = vpop.f32.mrf.mxu0
    %v716 = vadd.f32 %v635, %v715
    %v717 = vpop.f32.mrf.mxu0
    %718 = vmatprep.mubr.f32.mxu0 0.0
    %719 = vmatmul.mubr.f32.gmra.mxu0 %v647
    %v720 = vpop.f32.mrf.mxu0
    %v721 = vadd.f32 %v640, %v720
    %v722 = vpop.f32.mrf.mxu0
    %723 = vdwg.mxu0
    %724 = vrot.lane.b32.xlu0 %v139, 112
    %v725 = vpop.permute.xlu0 %724
    %726 = vrot.lane.b32.xlu0 %v144, 112
    %v727 = vpop.permute.xlu0 %726
    %728 = vrot.lane.b32.xlu0 %v139, 80
    %v729 = vpop.permute.xlu0 %728
    %730 = vrot.lane.b32.xlu0 %v144, 80
    %v731 = vpop.permute.xlu0 %730
    %v732 = vsel %vm166, %v725, 0
    %v734 = vsel %vm166, %v727, 0
    %v736 = vsel %vm166, %v729, 0
    %v738 = vsel %vm166, %v731, 0
    %740 = vmatprep.subr.mxu0 0.0
    %741 = vmatpush1.xpose.msra.mxu0 0.0
    %742 = vmatprep.subr.mxu0 0.0
    %743 = vmatpush1.xpose.msra.mxu0 0.0
    %744 = vmatprep.subr.mxu0 0.0
    %745 = vmatpush1.xpose.msra.mxu0 0.0
    %746 = vmatprep.subr.mxu0 0.0
    %747 = vmatpush1.xpose.msra.mxu0 0.0
    %748 = vmatprep.subr.mxu0 0.0
    %749 = vmatpush1.xpose.msra.mxu0 0.0
    %750 = vmatprep.subr.mxu0 0.0
    %751 = vmatpush1.xpose.msra.mxu0 0.0
    %752 = vmatprep.subr.mxu0 0.0
    %753 = vmatpush1.xpose.msra.mxu0 0.0
    %754 = vmatprep.subr.mxu0 0.0
    %755 = vmatpush1.xpose.msra.mxu0 0.0
    %756 = vmatprep.subr.mxu0 0.0
    %757 = vmatpush1.xpose.msra.mxu0 0.0
    %758 = vmatprep.subr.mxu0 0.0
    %759 = vmatpush1.xpose.msra.mxu0 0.0
    %760 = vmatprep.subr.mxu0 0.0
    %761 = vmatpush1.xpose.msra.mxu0 0.0
    %762 = vmatprep.subr.mxu0 0.0
    %763 = vmatpush1.xpose.msra.mxu0 0.0
    %764 = vmatprep.subr.mxu0 0.0
    %765 = vmatpush1.xpose.msra.mxu0 0.0
    %766 = vmatprep.subr.mxu0 0.0
    %767 = vmatpush1.xpose.msra.mxu0 0.0
    %768 = vmatprep.subr.mxu0 0.0
    %769 = vmatpush1.xpose.msra.mxu0 %v738
    %770 = vmatprep.subr.mxu0 0.0
    %771 = vmatpush1.xpose.msra.mxu0 %v736
    %772 = vmatprep.subr.mxu0 0.0
    %773 = vmatpush2.xpose.msra.mxu0 0.0
    %774 = vmatprep.subr.mxu0 0.0
    %775 = vmatpush2.xpose.msra.mxu0 0.0
    %776 = vmatprep.subr.mxu0 0.0
    %777 = vmatpush2.xpose.msra.mxu0 0.0
    %778 = vmatprep.subr.mxu0 0.0
    %779 = vmatpush2.xpose.msra.mxu0 0.0
    %780 = vmatprep.subr.mxu0 0.0
    %781 = vmatpush2.xpose.msra.mxu0 0.0
    %782 = vmatprep.subr.mxu0 0.0
    %783 = vmatpush2.xpose.msra.mxu0 0.0
    %784 = vmatprep.subr.mxu0 0.0
    %785 = vmatpush2.xpose.msra.mxu0 0.0
    %786 = vmatprep.subr.mxu0 0.0
    %787 = vmatpush2.xpose.msra.mxu0 0.0
    %788 = vmatprep.subr.mxu0 0.0
    %789 = vmatpush2.xpose.msra.mxu0 0.0
    %790 = vmatprep.subr.mxu0 0.0
    %791 = vmatpush2.xpose.msra.mxu0 0.0
    %792 = vmatprep.subr.mxu0 0.0
    %793 = vmatpush2.xpose.msra.mxu0 0.0
    %794 = vmatprep.subr.mxu0 0.0
    %795 = vmatpush2.xpose.msra.mxu0 0.0
    %796 = vmatprep.subr.mxu0 0.0
    %797 = vmatpush2.xpose.msra.mxu0 0.0
    %798 = vmatprep.subr.mxu0 0.0
    %799 = vmatpush2.xpose.msra.mxu0 0.0
    %800 = vmatprep.subr.mxu0 0.0
    %801 = vmatpush2.xpose.msra.mxu0 0.0
    %802 = vmatprep.subr.mxu0 0.0
    %803 = vmatpush2.xpose.msra.mxu0 0.0
    %804 = vmatprep.mubr.f32.mxu0 0.0
    %805 = vmatmul.mubr.f32.gmra.mxu0 %v732
    %v806 = vpop.f32.mrf.mxu0
    %v807 = vadd.f32 %v158, %v806
    %v808 = vpop.f32.mrf.mxu0
    %809 = vmatprep.mubr.f32.mxu0 0.0
    %810 = vmatmul.mubr.f32.gmra.mxu0 %v734
    %v811 = vpop.f32.mrf.mxu0
    %v812 = vadd.f32 %v159, %v811
    %v813 = vpop.f32.mrf.mxu0
    %814 = vdwg.mxu0
    %v815 = vsel %vm250, %v807, -inf
    %816 = vmax.xlane.f32.xlu0 %v815
    %v817 = vpop.xlane.xlu0 %816
    %v818 = vsel %vm250, %v812, -inf
    %819 = vmax.xlane.f32.xlu0 %v818
    %v820 = vpop.xlane.xlu0 %819
    %v821 = vsub.f32 %v807, %v817
    %v822 = vsub.f32 %v812, %v820
    %v823 = vmul.f32 %v821, 1.442695
    %v824 = vpow.pop %v823
    %v825 = vmul.f32 %v822, 1.442695
    %v826 = vpow.pop %v825
    %v827 = vsel %vm250, %v824, 0.0
    %828 = vadd.xlane.f32.xlu0 %v827
    %v829 = vpop.xlane.xlu0 %828
    %v830 = vsel %vm250, %v826, 0.0
    %831 = vadd.xlane.f32.xlu0 %v830
    %v832 = vpop.xlane.xlu0 %831
    %833 = vrot.lane.b32.xlu0 %v139, 48
    %v834 = vpop.permute.xlu0 %833
    %835 = vrot.lane.b32.xlu0 %v144, 48
    %v836 = vpop.permute.xlu0 %835
    %v840 = vsel %vm250, %v824, 0
    %v843 = vsel %vm250, %v826, 0
    %845 = vmatprep.subr.mxu0 0.0
    %846 = vmatpush1.msra.mxu0 0.0
    %847 = vmatprep.subr.mxu0 0.0
    %848 = vmatpush1.msra.mxu0 0.0
    %849 = vmatprep.subr.mxu0 0.0
    %850 = vmatpush1.msra.mxu0 0.0
    %851 = vmatprep.subr.mxu0 0.0
    %852 = vmatpush1.msra.mxu0 0.0
    %853 = vmatprep.subr.mxu0 0.0
    %854 = vmatpush1.msra.mxu0 0.0
    %855 = vmatprep.subr.mxu0 0.0
    %856 = vmatpush1.msra.mxu0 0.0
    %857 = vmatprep.subr.mxu0 0.0
    %858 = vmatpush1.msra.mxu0 0.0
    %859 = vmatprep.subr.mxu0 0.0
    %860 = vmatpush1.msra.mxu0 0.0
    %861 = vmatprep.subr.mxu0 0.0
    %862 = vmatpush1.msra.mxu0 0.0
    %863 = vmatprep.subr.mxu0 0.0
    %864 = vmatpush1.msra.mxu0 0.0
    %865 = vmatprep.subr.mxu0 0.0
    %866 = vmatpush1.msra.mxu0 0.0
    %867 = vmatprep.subr.mxu0 0.0
    %868 = vmatpush1.msra.mxu0 0.0
    %869 = vmatprep.subr.mxu0 0.0
    %870 = vmatpush1.msra.mxu0 0.0
    %871 = vmatprep.subr.mxu0 0.0
    %872 = vmatpush1.msra.mxu0 0.0
    %873 = vmatprep.subr.mxu0 0.0
    %874 = vmatpush1.msra.mxu0 %v836
    %875 = vmatprep.subr.mxu0 0.0
    %876 = vmatpush1.msra.mxu0 %v834
    %877 = vmatprep.subr.mxu0 0.0
    %878 = vmatpush2.msra.mxu0 0.0
    %879 = vmatprep.subr.mxu0 0.0
    %880 = vmatpush2.msra.mxu0 0.0
    %881 = vmatprep.subr.mxu0 0.0
    %882 = vmatpush2.msra.mxu0 0.0
    %883 = vmatprep.subr.mxu0 0.0
    %884 = vmatpush2.msra.mxu0 0.0
    %885 = vmatprep.subr.mxu0 0.0
    %886 = vmatpush2.msra.mxu0 0.0
    %887 = vmatprep.subr.mxu0 0.0
    %888 = vmatpush2.msra.mxu0 0.0
    %889 = vmatprep.subr.mxu0 0.0
    %890 = vmatpush2.msra.mxu0 0.0
    %891 = vmatprep.subr.mxu0 0.0
    %892 = vmatpush2.msra.mxu0 0.0
    %893 = vmatprep.subr.mxu0 0.0
    %894 = vmatpush2.msra.mxu0 0.0
    %895 = vmatprep.subr.mxu0 0.0
    %896 = vmatpush2.msra.mxu0 0.0
    %897 = vmatprep.subr.mxu0 0.0
    %898 = vmatpush2.msra.mxu0 0.0
    %899 = vmatprep.subr.mxu0 0.0
    %900 = vmatpush2.msra.mxu0 0.0
    %901 = vmatprep.subr.mxu0 0.0
    %902 = vmatpush2.msra.mxu0 0.0
    %903 = vmatprep.subr.mxu0 0.0
    %904 = vmatpush2.msra.mxu0 0.0
    %905 = vmatprep.subr.mxu0 0.0
    %906 = vmatpush2.msra.mxu0 0.0
    %907 = vmatprep.subr.mxu0 0.0
    %908 = vmatpush2.msra.mxu0 0.0
    %909 = vmatprep.mubr.f32.mxu0 0.0
    %910 = vmatmul.mubr.f32.gmra.mxu0 %v840
    %v911 = vpop.f32.mrf.mxu0
    %v912 = vadd.f32 0.0, %v911
    %v913 = vpop.f32.mrf.mxu0
    %914 = vmatprep.mubr.f32.mxu0 0.0
    %915 = vmatmul.mubr.f32.gmra.mxu0 %v843
    %v916 = vpop.f32.mrf.mxu0
    %v917 = vadd.f32 0.0, %v916
    %v918 = vpop.f32.mrf.mxu0
    %919 = vdwg.mxu0
    %v920 = vrcp.pop %v829
    %v921 = vrcp.pop %v832
    %v922 = vmul.f32 %v912, %v920
    %v923 = vmul.f32 %v917, %v921
    %v924 = vld [vmem:[#allocation5 + $0x48] sm:$0xff]
    %v926 = vsel %vm166, %v922, 0
    %v929 = vsel %vm166, %v923, 0
    %931 = vmatprep.subr.mxu0 0.0
    %932 = vmatpush1.msra.mxu0 0.0
    %933 = vmatprep.subr.mxu0 0.0
    %934 = vmatpush1.msra.mxu0 0.0
    %935 = vmatprep.subr.mxu0 0.0
    %936 = vmatpush1.msra.mxu0 0.0
    %937 = vmatprep.subr.mxu0 0.0
    %938 = vmatpush1.msra.mxu0 0.0
    %939 = vmatprep.subr.mxu0 0.0
    %940 = vmatpush1.msra.mxu0 0.0
    %941 = vmatprep.subr.mxu0 0.0
    %942 = vmatpush1.msra.mxu0 0.0
    %943 = vmatprep.subr.mxu0 0.0
    %944 = vmatpush1.msra.mxu0 0.0
    %945 = vmatprep.subr.mxu0 0.0
    %946 = vmatpush1.msra.mxu0 0.0
    %947 = vmatprep.subr.mxu0 0.0
    %948 = vmatpush1.msra.mxu0 0.0
    %949 = vmatprep.subr.mxu0 0.0
    %950 = vmatpush1.msra.mxu0 0.0
    %951 = vmatprep.subr.mxu0 0.0
    %952 = vmatpush1.msra.mxu0 0.0
    %953 = vmatprep.subr.mxu0 0.0
    %954 = vmatpush1.msra.mxu0 0.0
    %955 = vmatprep.subr.mxu0 0.0
    %956 = vmatpush1.msra.mxu0 0.0
    %957 = vmatprep.subr.mxu0 0.0
    %958 = vmatpush1.msra.mxu0 0.0
    %959 = vmatprep.subr.mxu0 0.0
    %960 = vmatpush1.msra.mxu0 0.0
    %961 = vmatprep.subr.mxu0 0.0
    %962 = vmatpush1.msra.mxu0 %v924
    %963 = vmatprep.subr.mxu0 0.0
    %964 = vmatpush2.msra.mxu0 0.0
    %965 = vmatprep.subr.mxu0 0.0
    %966 = vmatpush2.msra.mxu0 0.0
    %967 = vmatprep.subr.mxu0 0.0
    %968 = vmatpush2.msra.mxu0 0.0
    %969 = vmatprep.subr.mxu0 0.0
    %970 = vmatpush2.msra.mxu0 0.0
    %971 = vmatprep.subr.mxu0 0.0
    %972 = vmatpush2.msra.mxu0 0.0
    %973 = vmatprep.subr.mxu0 0.0
    %974 = vmatpush2.msra.mxu0 0.0
    %975 = vmatprep.subr.mxu0 0.0
    %976 = vmatpush2.msra.mxu0 0.0
    %977 = vmatprep.subr.mxu0 0.0
    %978 = vmatpush2.msra.mxu0 0.0
    %979 = vmatprep.subr.mxu0 0.0
    %980 = vmatpush2.msra.mxu0 0.0
    %981 = vmatprep.subr.mxu0 0.0
    %982 = vmatpush2.msra.mxu0 0.0
    %983 = vmatprep.subr.mxu0 0.0
    %984 = vmatpush2.msra.mxu0 0.0
    %985 = vmatprep.subr.mxu0 0.0
    %986 = vmatpush2.msra.mxu0 0.0
    %987 = vmatprep.subr.mxu0 0.0
    %988 = vmatpush2.msra.mxu0 0.0
    %989 = vmatprep.subr.mxu0 0.0
    %990 = vmatpush2.msra.mxu0 0.0
    %991 = vmatprep.subr.mxu0 0.0
    %992 = vmatpush2.msra.mxu0 0.0
    %993 = vmatprep.subr.mxu0 0.0
    %994 = vmatpush2.msra.mxu0 0.0
    %995 = vmatprep.mubr.f32.mxu0 0.0
    %996 = vmatmul.mubr.f32.gmra.mxu0 %v926
    %v997 = vpop.f32.mrf.mxu0
    %v998 = vadd.f32 0.0, %v997
    %v999 = vpop.f32.mrf.mxu0
    %1000 = vmatprep.mubr.f32.mxu0 0.0
    %1001 = vmatmul.mubr.f32.gmra.mxu0 %v929
    %v1002 = vpop.f32.mrf.mxu0
    %v1003 = vadd.f32 0.0, %v1002
    %v1004 = vpop.f32.mrf.mxu0
    %1005 = vdwg.mxu0
    %v1006 = vadd.f32 %v716, %v998
    %v1007 = vadd.f32 %v721, %v1003
    %1008 = vrot.lane.b32.xlu0 %v139, 104
    %v1009 = vpop.permute.xlu0 %1008
    %1010 = vrot.lane.b32.xlu0 %v144, 104
    %v1011 = vpop.permute.xlu0 %1010
    %1012 = vrot.lane.b32.xlu0 %v139, 72
    %v1013 = vpop.permute.xlu0 %1012
    %1014 = vrot.lane.b32.xlu0 %v144, 72
    %v1015 = vpop.permute.xlu0 %1014
    %v1016 = vsel %vm166, %v1009, 0
    %v1018 = vsel %vm166, %v1011, 0
    %v1020 = vsel %vm166, %v1013, 0
    %v1022 = vsel %vm166, %v1015, 0
    %1024 = vmatprep.subr.mxu0 0.0
    %1025 = vmatpush1.xpose.msra.mxu0 0.0
    %1026 = vmatprep.subr.mxu0 0.0
    %1027 = vmatpush1.xpose.msra.mxu0 0.0
    %1028 = vmatprep.subr.mxu0 0.0
    %1029 = vmatpush1.xpose.msra.mxu0 0.0
    %1030 = vmatprep.subr.mxu0 0.0
    %1031 = vmatpush1.xpose.msra.mxu0 0.0
    %1032 = vmatprep.subr.mxu0 0.0
    %1033 = vmatpush1.xpose.msra.mxu0 0.0
    %1034 = vmatprep.subr.mxu0 0.0
    %1035 = vmatpush1.xpose.msra.mxu0 0.0
    %1036 = vmatprep.subr.mxu0 0.0
    %1037 = vmatpush1.xpose.msra.mxu0 0.0
    %1038 = vmatprep.subr.mxu0 0.0
    %1039 = vmatpush1.xpose.msra.mxu0 0.0
    %1040 = vmatprep.subr.mxu0 0.0
    %1041 = vmatpush1.xpose.msra.mxu0 0.0
    %1042 = vmatprep.subr.mxu0 0.0
    %1043 = vmatpush1.xpose.msra.mxu0 0.0
    %1044 = vmatprep.subr.mxu0 0.0
    %1045 = vmatpush1.xpose.msra.mxu0 0.0
    %1046 = vmatprep.subr.mxu0 0.0
    %1047 = vmatpush1.xpose.msra.mxu0 0.0
    %1048 = vmatprep.subr.mxu0 0.0
    %1049 = vmatpush1.xpose.msra.mxu0 0.0
    %1050 = vmatprep.subr.mxu0 0.0
    %1051 = vmatpush1.xpose.msra.mxu0 0.0
    %1052 = vmatprep.subr.mxu0 0.0
    %1053 = vmatpush1.xpose.msra.mxu0 %v1022
    %1054 = vmatprep.subr.mxu0 0.0
    %1055 = vmatpush1.xpose.msra.mxu0 %v1020
    %1056 = vmatprep.subr.mxu0 0.0
    %1057 = vmatpush2.xpose.msra.mxu0 0.0
    %1058 = vmatprep.subr.mxu0 0.0
    %1059 = vmatpush2.xpose.msra.mxu0 0.0
    %1060 = vmatprep.subr.mxu0 0.0
    %1061 = vmatpush2.xpose.msra.mxu0 0.0
    %1062 = vmatprep.subr.mxu0 0.0
    %1063 = vmatpush2.xpose.msra.mxu0 0.0
    %1064 = vmatprep.subr.mxu0 0.0
    %1065 = vmatpush2.xpose.msra.mxu0 0.0
    %1066 = vmatprep.subr.mxu0 0.0
    %1067 = vmatpush2.xpose.msra.mxu0 0.0
    %1068 = vmatprep.subr.mxu0 0.0
    %1069 = vmatpush2.xpose.msra.mxu0 0.0
    %1070 = vmatprep.subr.mxu0 0.0
    %1071 = vmatpush2.xpose.msra.mxu0 0.0
    %1072 = vmatprep.subr.mxu0 0.0
    %1073 = vmatpush2.xpose.msra.mxu0 0.0
    %1074 = vmatprep.subr.mxu0 0.0
    %1075 = vmatpush2.xpose.msra.mxu0 0.0
    %1076 = vmatprep.subr.mxu0 0.0
    %1077 = vmatpush2.xpose.msra.mxu0 0.0
    %1078 = vmatprep.subr.mxu0 0.0
    %1079 = vmatpush2.xpose.msra.mxu0 0.0
    %1080 = vmatprep.subr.mxu0 0.0
    %1081 = vmatpush2.xpose.msra.mxu0 0.0
    %1082 = vmatprep.subr.mxu0 0.0
    %1083 = vmatpush2.xpose.msra.mxu0 0.0
    %1084 = vmatprep.subr.mxu0 0.0
    %1085 = vmatpush2.xpose.msra.mxu0 0.0
    %1086 = vmatprep.subr.mxu0 0.0
    %1087 = vmatpush2.xpose.msra.mxu0 0.0
    %1088 = vmatprep.mubr.f32.mxu0 0.0
    %1089 = vmatmul.mubr.f32.gmra.mxu0 %v1016
    %v1090 = vpop.f32.mrf.mxu0
    %v1091 = vadd.f32 %v158, %v1090
    %v1092 = vpop.f32.mrf.mxu0
    %1093 = vmatprep.mubr.f32.mxu0 0.0
    %1094 = vmatmul.mubr.f32.gmra.mxu0 %v1018
    %v1095 = vpop.f32.mrf.mxu0
    %v1096 = vadd.f32 %v159, %v1095
    %v1097 = vpop.f32.mrf.mxu0
    %1098 = vdwg.mxu0
    %v1099 = vsel %vm250, %v1091, -inf
    %1100 = vmax.xlane.f32.xlu0 %v1099
    %v1101 = vpop.xlane.xlu0 %1100
    %v1102 = vsel %vm250, %v1096, -inf
    %1103 = vmax.xlane.f32.xlu0 %v1102
    %v1104 = vpop.xlane.xlu0 %1103
    %v1105 = vsub.f32 %v1091, %v1101
    %v1106 = vsub.f32 %v1096, %v1104
    %v1107 = vmul.f32 %v1105, 1.442695
    %v1108 = vpow.pop %v1107
    %v1109 = vmul.f32 %v1106, 1.442695
    %v1110 = vpow.pop %v1109
    %v1111 = vsel %vm250, %v1108, 0.0
    %1112 = vadd.xlane.f32.xlu0 %v1111
    %v1113 = vpop.xlane.xlu0 %1112
    %v1114 = vsel %vm250, %v1110, 0.0
    %1115 = vadd.xlane.f32.xlu0 %v1114
    %v1116 = vpop.xlane.xlu0 %1115
    %1117 = vrot.lane.b32.xlu0 %v139, 40
    %v1118 = vpop.permute.xlu0 %1117
    %1119 = vrot.lane.b32.xlu0 %v144, 40
    %v1120 = vpop.permute.xlu0 %1119
    %v1124 = vsel %vm250, %v1108, 0
    %v1127 = vsel %vm250, %v1110, 0
    %1129 = vmatprep.subr.mxu0 0.0
    %1130 = vmatpush1.msra.mxu0 0.0
    %1131 = vmatprep.subr.mxu0 0.0
    %1132 = vmatpush1.msra.mxu0 0.0
    %1133 = vmatprep.subr.mxu0 0.0
    %1134 = vmatpush1.msra.mxu0 0.0
    %1135 = vmatprep.subr.mxu0 0.0
    %1136 = vmatpush1.msra.mxu0 0.0
    %1137 = vmatprep.subr.mxu0 0.0
    %1138 = vmatpush1.msra.mxu0 0.0
    %1139 = vmatprep.subr.mxu0 0.0
    %1140 = vmatpush1.msra.mxu0 0.0
    %1141 = vmatprep.subr.mxu0 0.0
    %1142 = vmatpush1.msra.mxu0 0.0
    %1143 = vmatprep.subr.mxu0 0.0
    %1144 = vmatpush1.msra.mxu0 0.0
    %1145 = vmatprep.subr.mxu0 0.0
    %1146 = vmatpush1.msra.mxu0 0.0
    %1147 = vmatprep.subr.mxu0 0.0
    %1148 = vmatpush1.msra.mxu0 0.0
    %1149 = vmatprep.subr.mxu0 0.0
    %1150 = vmatpush1.msra.mxu0 0.0
    %1151 = vmatprep.subr.mxu0 0.0
    %1152 = vmatpush1.msra.mxu0 0.0
    %1153 = vmatprep.subr.mxu0 0.0
    %1154 = vmatpush1.msra.mxu0 0.0
    %1155 = vmatprep.subr.mxu0 0.0
    %1156 = vmatpush1.msra.mxu0 0.0
    %1157 = vmatprep.subr.mxu0 0.0
    %1158 = vmatpush1.msra.mxu0 %v1120
    %1159 = vmatprep.subr.mxu0 0.0
    %1160 = vmatpush1.msra.mxu0 %v1118
    %1161 = vmatprep.subr.mxu0 0.0
    %1162 = vmatpush2.msra.mxu0 0.0
    %1163 = vmatprep.subr.mxu0 0.0
    %1164 = vmatpush2.msra.mxu0 0.0
    %1165 = vmatprep.subr.mxu0 0.0
    %1166 = vmatpush2.msra.mxu0 0.0
    %1167 = vmatprep.subr.mxu0 0.0
    %1168 = vmatpush2.msra.mxu0 0.0
    %1169 = vmatprep.subr.mxu0 0.0
    %1170 = vmatpush2.msra.mxu0 0.0
    %1171 = vmatprep.subr.mxu0 0.0
    %1172 = vmatpush2.msra.mxu0 0.0
    %1173 = vmatprep.subr.mxu0 0.0
    %1174 = vmatpush2.msra.mxu0 0.0
    %1175 = vmatprep.subr.mxu0 0.0
    %1176 = vmatpush2.msra.mxu0 0.0
    %1177 = vmatprep.subr.mxu0 0.0
    %1178 = vmatpush2.msra.mxu0 0.0
    %1179 = vmatprep.subr.mxu0 0.0
    %1180 = vmatpush2.msra.mxu0 0.0
    %1181 = vmatprep.subr.mxu0 0.0
    %1182 = vmatpush2.msra.mxu0 0.0
    %1183 = vmatprep.subr.mxu0 0.0
    %1184 = vmatpush2.msra.mxu0 0.0
    %1185 = vmatprep.subr.mxu0 0.0
    %1186 = vmatpush2.msra.mxu0 0.0
    %1187 = vmatprep.subr.mxu0 0.0
    %1188 = vmatpush2.msra.mxu0 0.0
    %1189 = vmatprep.subr.mxu0 0.0
    %1190 = vmatpush2.msra.mxu0 0.0
    %1191 = vmatprep.subr.mxu0 0.0
    %1192 = vmatpush2.msra.mxu0 0.0
    %1193 = vmatprep.mubr.f32.mxu0 0.0
    %1194 = vmatmul.mubr.f32.gmra.mxu0 %v1124
    %v1195 = vpop.f32.mrf.mxu0
    %v1196 = vadd.f32 0.0, %v1195
    %v1197 = vpop.f32.mrf.mxu0
    %1198 = vmatprep.mubr.f32.mxu0 0.0
    %1199 = vmatmul.mubr.f32.gmra.mxu0 %v1127
    %v1200 = vpop.f32.mrf.mxu0
    %v1201 = vadd.f32 0.0, %v1200
    %v1202 = vpop.f32.mrf.mxu0
    %1203 = vdwg.mxu0
    %v1204 = vrcp.pop %v1113
    %v1205 = vrcp.pop %v1116
    %v1206 = vmul.f32 %v1196, %v1204
    %v1207 = vmul.f32 %v1201, %v1205
    %v1208 = vld [vmem:[#allocation5 + $0x68] sm:$0xff]
    %v1210 = vsel %vm166, %v1206, 0
    %v1213 = vsel %vm166, %v1207, 0
    %1215 = vmatprep.subr.mxu0 0.0
    %1216 = vmatpush1.msra.mxu0 0.0
    %1217 = vmatprep.subr.mxu0 0.0
    %1218 = vmatpush1.msra.mxu0 0.0
    %1219 = vmatprep.subr.mxu0 0.0
    %1220 = vmatpush1.msra.mxu0 0.0
    %1221 = vmatprep.subr.mxu0 0.0
    %1222 = vmatpush1.msra.mxu0 0.0
    %1223 = vmatprep.subr.mxu0 0.0
    %1224 = vmatpush1.msra.mxu0 0.0
    %1225 = vmatprep.subr.mxu0 0.0
    %1226 = vmatpush1.msra.mxu0 0.0
    %1227 = vmatprep.subr.mxu0 0.0
    %1228 = vmatpush1.msra.mxu0 0.0
    %1229 = vmatprep.subr.mxu0 0.0
    %1230 = vmatpush1.msra.mxu0 0.0
    %1231 = vmatprep.subr.mxu0 0.0
    %1232 = vmatpush1.msra.mxu0 0.0
    %1233 = vmatprep.subr.mxu0 0.0
    %1234 = vmatpush1.msra.mxu0 0.0
    %1235 = vmatprep.subr.mxu0 0.0
    %1236 = vmatpush1.msra.mxu0 0.0
    %1237 = vmatprep.subr.mxu0 0.0
    %1238 = vmatpush1.msra.mxu0 0.0
    %1239 = vmatprep.subr.mxu0 0.0
    %1240 = vmatpush1.msra.mxu0 0.0
    %1241 = vmatprep.subr.mxu0 0.0
    %1242 = vmatpush1.msra.mxu0 0.0
    %1243 = vmatprep.subr.mxu0 0.0
    %1244 = vmatpush1.msra.mxu0 0.0
    %1245 = vmatprep.subr.mxu0 0.0
    %1246 = vmatpush1.msra.mxu0 %v1208
    %1247 = vmatprep.subr.mxu0 0.0
    %1248 = vmatpush2.msra.mxu0 0.0
    %1249 = vmatprep.subr.mxu0 0.0
    %1250 = vmatpush2.msra.mxu0 0.0
    %1251 = vmatprep.subr.mxu0 0.0
    %1252 = vmatpush2.msra.mxu0 0.0
    %1253 = vmatprep.subr.mxu0 0.0
    %1254 = vmatpush2.msra.mxu0 0.0
    %1255 = vmatprep.subr.mxu0 0.0
    %1256 = vmatpush2.msra.mxu0 0.0
    %1257 = vmatprep.subr.mxu0 0.0
    %1258 = vmatpush2.msra.mxu0 0.0
    %1259 = vmatprep.subr.mxu0 0.0
    %1260 = vmatpush2.msra.mxu0 0.0
    %1261 = vmatprep.subr.mxu0 0.0
    %1262 = vmatpush2.msra.mxu0 0.0
    %1263 = vmatprep.subr.mxu0 0.0
    %1264 = vmatpush2.msra.mxu0 0.0
    %1265 = vmatprep.subr.mxu0 0.0
    %1266 = vmatpush2.msra.mxu0 0.0
    %1267 = vmatprep.subr.mxu0 0.0
    %1268 = vmatpush2.msra.mxu0 0.0
    %1269 = vmatprep.subr.mxu0 0.0
    %1270 = vmatpush2.msra.mxu0 0.0
    %1271 = vmatprep.subr.mxu0 0.0
    %1272 = vmatpush2.msra.mxu0 0.0
    %1273 = vmatprep.subr.mxu0 0.0
    %1274 = vmatpush2.msra.mxu0 0.0
    %1275 = vmatprep.subr.mxu0 0.0
    %1276 = vmatpush2.msra.mxu0 0.0
    %1277 = vmatprep.subr.mxu0 0.0
    %1278 = vmatpush2.msra.mxu0 0.0
    %1279 = vmatprep.mubr.f32.mxu0 0.0
    %1280 = vmatmul.mubr.f32.gmra.mxu0 %v1210
    %v1281 = vpop.f32.mrf.mxu0
    %v1282 = vadd.f32 0.0, %v1281
    %v1283 = vpop.f32.mrf.mxu0
    %1284 = vmatprep.mubr.f32.mxu0 0.0
    %1285 = vmatmul.mubr.f32.gmra.mxu0 %v1213
    %v1286 = vpop.f32.mrf.mxu0
    %v1287 = vadd.f32 0.0, %v1286
    %v1288 = vpop.f32.mrf.mxu0
    %1289 = vdwg.mxu0
    %v1290 = vadd.f32 %v1006, %v1282
    %v1291 = vadd.f32 %v1007, %v1287
    %v1292 = vld [vmem:[#allocation7 + $0x1] sm:$0x1]
    %v1293 = vlaneseq
    %v1294 = vshrl.u32 %v1293, 7
    %v1295 = vsub.s32 0, %v1294
    %v1296 = vrot.slane %v1292, %v1295
    %v1297 = vadd.f32 %v1290, %v1296
    %v1298 = vadd.f32 %v1291, %v1296
    %v1299 = vadd.f32 %v54, %v1297
    %v1300 = vadd.f32 %v55, %v1298
    %v1301 = vsel %vm65, %v1299, 0.0
    %1302 = vadd.xlane.f32.xlu0 %v1301
    %v1303 = vpop.xlane.xlu0 %1302
    %v1304 = vsel %vm65, %v1300, 0.0
    %1305 = vadd.xlane.f32.xlu0 %v1304
    %v1306 = vpop.xlane.xlu0 %1305
    %v1307 = vrcp.pop 32.0
    %v1308 = vmul.f32 %v1303, %v1307
    %v1309 = vmul.f32 %v1306, %v1307
    %v1310 = vsub.f32 %v1299, %v1308
    %v1311 = vsub.f32 %v1300, %v1309
    %v1312 = vmul.f32 %v1310, %v1310
    %v1313 = vmul.f32 %v1311, %v1311
    %v1314 = vsel %vm65, %v1312, 0.0
    %1315 = vadd.xlane.f32.xlu0 %v1314
    %v1316 = vpop.xlane.xlu0 %1315
    %v1317 = vsel %vm65, %v1313, 0.0
    %1318 = vadd.xlane.f32.xlu0 %v1317
    %v1319 = vpop.xlane.xlu0 %1318
    %v1320 = vmul.f32 %v1316, %v1307
    %v1321 = vmul.f32 %v1319, %v1307
    %v1322 = vadd.f32 %v1320, 1e-05
    %v1323 = vadd.f32 %v1321, 1e-05
    %v1324 = vrsqrt.pop %v1322
    %v1325 = vrsqrt.pop %v1323
    %v1326 = vmul.f32 %v1310, %v1324
    %v1327 = vmul.f32 %v1311, %v1325
    %v1328 = vld [vmem:[#allocation7 + $0x4] sm:$0x1]
    %v1329 = vlaneseq
    %v1330 = vshrl.u32 %v1329, 7
    %v1331 = vsub.s32 0, %v1330
    %v1332 = vrot.slane %v1328, %v1331
    %v1333 = vmul.f32 %v1326, %v1332
    %v1334 = vmul.f32 %v1327, %v1332
    %v1335 = vld [vmem:[#allocation7 + $0x5] sm:$0x1]
    %v1336 = vlaneseq
    %v1337 = vshrl.u32 %v1336, 7
    %v1338 = vsub.s32 0, %v1337
    %v1339 = vrot.slane %v1335, %v1338
    %v1340 = vadd.f32 %v1333, %v1339
    %v1341 = vadd.f32 %v1334, %v1339
    %v1342 = vld [vmem:[#allocation5 + $0x10] sm:$0xff]
    %v1343 = vld [vmem:[#allocation5 + $0x30] sm:$0xff]
    %v1344 = vld [vmem:[#allocation5 + $0x50] sm:$0xff]
    %v1345 = vld [vmem:[#allocation5 + $0x70] sm:$0xff]
    %v1346 = vld [vmem:[#allocation7 + $0x2] sm:$0x1]
    %v1347 = vlaneseq
    %v1348 = vshrl.u32 %v1347, 7
    %v1349 = vsub.s32 0, %v1348
    %v1350 = vrot.slane %v1346, %v1349
    %v1352 = vsel %vm65, %v1340, 0
    %v1355 = vsel %vm65, %v1341, 0
    %1357 = vmatprep.subr.mxu0 0.0
    %1358 = vmatpush1.msra.mxu0 0.0
    %1359 = vmatprep.subr.mxu0 0.0
    %1360 = vmatpush1.msra.mxu0 0.0
    %1361 = vmatprep.subr.mxu0 0.0
    %1362 = vmatpush1.msra.mxu0 0.0
    %1363 = vmatprep.subr.mxu0 0.0
    %1364 = vmatpush1.msra.mxu0 0.0
    %1365 = vmatprep.subr.mxu0 0.0
    %1366 = vmatpush1.msra.mxu0 0.0
    %1367 = vmatprep.subr.mxu0 0.0
    %1368 = vmatpush1.msra.mxu0 0.0
    %1369 = vmatprep.subr.mxu0 0.0
    %1370 = vmatpush1.msra.mxu0 0.0
    %1371 = vmatprep.subr.mxu0 0.0
    %1372 = vmatpush1.msra.mxu0 0.0
    %1373 = vmatprep.subr.mxu0 0.0
    %1374 = vmatpush1.msra.mxu0 0.0
    %1375 = vmatprep.subr.mxu0 0.0
    %1376 = vmatpush1.msra.mxu0 0.0
    %1377 = vmatprep.subr.mxu0 0.0
    %1378 = vmatpush1.msra.mxu0 0.0
    %1379 = vmatprep.subr.mxu0 0.0
    %1380 = vmatpush1.msra.mxu0 0.0
    %1381 = vmatprep.subr.mxu0 0.0
    %1382 = vmatpush1.msra.mxu0 %v1345
    %1383 = vmatprep.subr.mxu0 0.0
    %1384 = vmatpush1.msra.mxu0 %v1344
    %1385 = vmatprep.subr.mxu0 0.0
    %1386 = vmatpush1.msra.mxu0 %v1343
    %1387 = vmatprep.subr.mxu0 0.0
    %1388 = vmatpush1.msra.mxu0 %v1342
    %1389 = vmatprep.subr.mxu0 0.0
    %1390 = vmatpush2.msra.mxu0 0.0
    %1391 = vmatprep.subr.mxu0 0.0
    %1392 = vmatpush2.msra.mxu0 0.0
    %1393 = vmatprep.subr.mxu0 0.0
    %1394 = vmatpush2.msra.mxu0 0.0
    %1395 = vmatprep.subr.mxu0 0.0
    %1396 = vmatpush2.msra.mxu0 0.0
    %1397 = vmatprep.subr.mxu0 0.0
    %1398 = vmatpush2.msra.mxu0 0.0
    %1399 = vmatprep.subr.mxu0 0.0
    %1400 = vmatpush2.msra.mxu0 0.0
    %1401 = vmatprep.subr.mxu0 0.0
    %1402 = vmatpush2.msra.mxu0 0.0
    %1403 = vmatprep.subr.mxu0 0.0
    %1404 = vmatpush2.msra.mxu0 0.0
    %1405 = vmatprep.subr.mxu0 0.0
    %1406 = vmatpush2.msra.mxu0 0.0
    %1407 = vmatprep.subr.mxu0 0.0
    %1408 = vmatpush2.msra.mxu0 0.0
    %1409 = vmatprep.subr.mxu0 0.0
    %1410 = vmatpush2.msra.mxu0 0.0
    %1411 = vmatprep.subr.mxu0 0.0
    %1412 = vmatpush2.msra.mxu0 0.0
    %1413 = vmatprep.subr.mxu0 0.0
    %1414 = vmatpush2.msra.mxu0 0.0
    %1415 = vmatprep.subr.mxu0 0.0
    %1416 = vmatpush2.msra.mxu0 0.0
    %1417 = vmatprep.subr.mxu0 0.0
    %1418 = vmatpush2.msra.mxu0 0.0
    %1419 = vmatprep.subr.mxu0 0.0
    %1420 = vmatpush2.msra.mxu0 0.0
    %1421 = vmatprep.mubr.f32.mxu0 0.0
    %1422 = vmatmul.mubr.f32.gmra.mxu0 %v1352
    %v1423 = vpop.f32.mrf.mxu0
    %v1424 = vadd.f32 %v1350, %v1423
    %v1425 = vpop.f32.mrf.mxu0
    %1426 = vmatprep.mubr.f32.mxu0 0.0
    %1427 = vmatmul.mubr.f32.gmra.mxu0 %v1355
    %v1428 = vpop.f32.mrf.mxu0
    %v1429 = vadd.f32 %v1350, %v1428
    %v1430 = vpop.f32.mrf.mxu0
    %1431 = vdwg.mxu0
    %v1432 = vmax.f32 %v1424, 0.0
    %v1433 = vmax.f32 %v1429, 0.0
    %v1434 = vld [vmem:[#allocation5 + $0x18] sm:$0xff]
    %v1435 = vld [vmem:[#allocation5 + $0x38] sm:$0xff]
    %v1436 = vld [vmem:[#allocation5 + $0x58] sm:$0xff]
    %v1437 = vld [vmem:[#allocation5 + $0x78] sm:$0xff]
    %v1438 = vld [vmem:[#allocation5 + $0x98] sm:$0xff]
    %v1439 = vld [vmem:[#allocation5 + $0xb8] sm:$0xff]
    %v1440 = vld [vmem:[#allocation5 + $0xd8] sm:$0xff]
    %v1441 = vld [vmem:[#allocation5 + $0xf8] sm:$0xff]
    %v1442 = vld [vmem:[#allocation7 + $0x3] sm:$0x1]
    %v1443 = vlaneseq
    %v1444 = vshrl.u32 %v1443, 7
    %v1445 = vsub.s32 0, %v1444
    %v1446 = vrot.slane %v1442, %v1445
    %vm1447 = vcmask 523264
    %v1449 = vsel %vm1447, %v1432, 0
    %v1452 = vsel %vm1447, %v1433, 0
    %1454 = vmatprep.subr.mxu0 0.0
    %1455 = vmatpush1.msra.mxu0 0.0
    %1456 = vmatprep.subr.mxu0 0.0
    %1457 = vmatpush1.msra.mxu0 0.0
    %1458 = vmatprep.subr.mxu0 0.0
    %1459 = vmatpush1.msra.mxu0 0.0
    %1460 = vmatprep.subr.mxu0 0.0
    %1461 = vmatpush1.msra.mxu0 0.0
    %1462 = vmatprep.subr.mxu0 0.0
    %1463 = vmatpush1.msra.mxu0 0.0
    %1464 = vmatprep.subr.mxu0 0.0
    %1465 = vmatpush1.msra.mxu0 0.0
    %1466 = vmatprep.subr.mxu0 0.0
    %1467 = vmatpush1.msra.mxu0 0.0
    %1468 = vmatprep.subr.mxu0 0.0
    %1469 = vmatpush1.msra.mxu0 0.0
    %1470 = vmatprep.subr.mxu0 0.0
    %1471 = vmatpush1.msra.mxu0 %v1441
    %1472 = vmatprep.subr.mxu0 0.0
    %1473 = vmatpush1.msra.mxu0 %v1440
    %1474 = vmatprep.subr.mxu0 0.0
    %1475 = vmatpush1.msra.mxu0 %v1439
    %1476 = vmatprep.subr.mxu0 0.0
    %1477 = vmatpush1.msra.mxu0 %v1438
    %1478 = vmatprep.subr.mxu0 0.0
    %1479 = vmatpush1.msra.mxu0 %v1437
    %1480 = vmatprep.subr.mxu0 0.0
    %1481 = vmatpush1.msra.mxu0 %v1436
    %1482 = vmatprep.subr.mxu0 0.0
    %1483 = vmatpush1.msra.mxu0 %v1435
    %1484 = vmatprep.subr.mxu0 0.0
    %1485 = vmatpush1.msra.mxu0 %v1434
    %1486 = vmatprep.subr.mxu0 0.0
    %1487 = vmatpush2.msra.mxu0 0.0
    %1488 = vmatprep.subr.mxu0 0.0
    %1489 = vmatpush2.msra.mxu0 0.0
    %1490 = vmatprep.subr.mxu0 0.0
    %1491 = vmatpush2.msra.mxu0 0.0
    %1492 = vmatprep.subr.mxu0 0.0
    %1493 = vmatpush2.msra.mxu0 0.0
    %1494 = vmatprep.subr.mxu0 0.0
    %1495 = vmatpush2.msra.mxu0 0.0
    %1496 = vmatprep.subr.mxu0 0.0
    %1497 = vmatpush2.msra.mxu0 0.0
    %1498 = vmatprep.subr.mxu0 0.0
    %1499 = vmatpush2.msra.mxu0 0.0
    %1500 = vmatprep.subr.mxu0 0.0
    %1501 = vmatpush2.msra.mxu0 0.0
    %1502 = vmatprep.subr.mxu0 0.0
    %1503 = vmatpush2.msra.mxu0 0.0
    %1504 = vmatprep.subr.mxu0 0.0
    %1505 = vmatpush2.msra.mxu0 0.0
    %1506 = vmatprep.subr.mxu0 0.0
    %1507 = vmatpush2.msra.mxu0 0.0
    %1508 = vmatprep.subr.mxu0 0.0
    %1509 = vmatpush2.msra.mxu0 0.0
    %1510 = vmatprep.subr.mxu0 0.0
    %1511 = vmatpush2.msra.mxu0 0.0
    %1512 = vmatprep.subr.mxu0 0.0
    %1513 = vmatpush2.msra.mxu0 0.0
    %1514 = vmatprep.subr.mxu0 0.0
    %1515 = vmatpush2.msra.mxu0 0.0
    %1516 = vmatprep.subr.mxu0 0.0
    %1517 = vmatpush2.msra.mxu0 0.0
    %1518 = vmatprep.mubr.f32.mxu0 0.0
    %1519 = vmatmul.mubr.f32.gmra.mxu0 %v1449
    %v1520 = vpop.f32.mrf.mxu0
    %v1521 = vadd.f32 %v1446, %v1520
    %v1522 = vpop.f32.mrf.mxu0
    %1523 = vmatprep.mubr.f32.mxu0 0.0
    %1524 = vmatmul.mubr.f32.gmra.mxu0 %v1452
    %v1525 = vpop.f32.mrf.mxu0
    %v1526 = vadd.f32 %v1446, %v1525
    %v1527 = vpop.f32.mrf.mxu0
    %1528 = vdwg.mxu0
    %v1529 = vadd.f32 %v1340, %v1521
    %v1530 = vadd.f32 %v1341, %v1526
    %v1531 = vsel %vm65, %v1529, 0.0
    %1532 = vadd.xlane.f32.xlu0 %v1531
    %v1533 = vpop.xlane.xlu0 %1532
    %v1534 = vsel %vm65, %v1530, 0.0
    %1535 = vadd.xlane.f32.xlu0 %v1534
    %v1536 = vpop.xlane.xlu0 %1535
    %v1537 = vmul.f32 %v1533, %v1307
    %v1538 = vmul.f32 %v1536, %v1307
    %v1539 = vsub.f32 %v1529, %v1537
    %v1540 = vsub.f32 %v1530, %v1538
    %v1541 = vmul.f32 %v1539, %v1539
    %v1542 = vmul.f32 %v1540, %v1540
    %v1543 = vsel %vm65, %v1541, 0.0
    %1544 = vadd.xlane.f32.xlu0 %v1543
    %v1545 = vpop.xlane.xlu0 %1544
    %v1546 = vsel %vm65, %v1542, 0.0
    %1547 = vadd.xlane.f32.xlu0 %v1546
    %v1548 = vpop.xlane.xlu0 %1547
    %v1549 = vmul.f32 %v1545, %v1307
    %v1550 = vmul.f32 %v1548, %v1307
    %v1551 = vadd.f32 %v1549, 1e-05
    %v1552 = vadd.f32 %v1550, 1e-05
    %v1553 = vrsqrt.pop %v1551
    %v1554 = vrsqrt.pop %v1552
    %v1555 = vmul.f32 %v1539, %v1553
    %v1556 = vmul.f32 %v1540, %v1554
    %v1557 = vld [vmem:[#allocation7 + $0x6] sm:$0x1]
    %v1558 = vlaneseq
    %v1559 = vshrl.u32 %v1558, 7
    %v1560 = vsub.s32 0, %v1559
    %v1561 = vrot.slane %v1557, %v1560
    %v1562 = vmul.f32 %v1555, %v1561
    %v1563 = vmul.f32 %v1556, %v1561
    %v1564 = vld [vmem:[#allocation7 + $0x7] sm:$0x1]
    %v1565 = vlaneseq
    %v1566 = vshrl.u32 %v1565, 7
    %v1567 = vsub.s32 0, %v1566
    %v1568 = vrot.slane %v1564, %v1567
    %v1569 = vadd.f32 %v1562, %v1568
    %v1570 = vadd.f32 %v1563, %v1568
    %1571 = vst.msk [vmem:[#allocation8] sm:$0xff] %vm65, %v1569
    %1572 = vst.msk [vmem:[#allocation8 + $0x8] sm:$0xff] %vm65, %v1570
    // Predicated region
    $region26: #{tpu_custom_call.1} parent=1 // pred_check
      _
    $region27: #{tpu_custom_call.1} parent=1 // pred_check_branch
      %1574 = sbr.rel (0) target = $region29
    $region28: #{tpu_custom_call.1} parent=1 // pred_region
      %s1576 = ssub.s32 256, 256
      %1577 = vsyncadd [#allocation4], %s1576
      %s1578 = sshll.u32 [#allocation8], 4
      %s1579 = int_to_ptr.vmem [resolvable:$true] %s1578
      %1584 = dma.vmem_to_hbm [thread:$0]  %s1579, 256, %s3, [#allocation4], 128, 128, 8
    $region29: #{tpu_custom_call.1} parent=1 // pred_fallthru
      _
    // Predicated region
    $region30: #{tpu_custom_call.1} parent=1 // pred_check
      _
    $region31: #{tpu_custom_call.1} parent=1 // pred_check_branch
      %1586 = sbr.rel (0) target = $region33
    $region32: #{tpu_custom_call.1} parent=1 // pred_region
      %1587 = dma.done [#allocation4], 256
    $region33: #{tpu_custom_call.1} parent=1 // pred_fallthru
      _
    %1588 = vsyncpa [#allocation3], 1
    %1589 = vsyncpa [#allocation6], 1
    %1590 = vsyncpa [#allocation4], 1

</llo_original>
